<compile_context>
chip_gen: v5e
topology: v5e:2x2
jax: 0.10.0
libtpu: 0.0.40
codegen_flags: <defaults>
</compile_context>

<pallas_src>
import functools

import numpy as np
import jax
import jax.numpy as jnp
from jax import lax
from jax.experimental import pallas as pl
from jax.experimental.pallas import tpu as pltpu


# ----------------------------------------------------------------------------
# Constant 0/1 selection matrices (built on host, folded as jit constants)
# ----------------------------------------------------------------------------
def _shift_matrix(nb, bw):
    """S @ x gives rows shifted by +1 within each batch block of width bw
    (last row of each block becomes 0)."""
    n = nb * bw
    s = np.zeros((n, n), np.float32)
    for b in range(nb):
        for w in range(bw - 1):
            s[b * bw + w, b * bw + w + 1] = 1.0
    return jnp.asarray(s)


def _pool_pick_matrix(nb, bw, wout):
    """P @ x picks columns w in {0, 2, 4, ...} of each batch block."""
    s = np.zeros((nb * wout, nb * bw), np.float32)
    for b in range(nb):
        for w in range(wout):
            s[b * wout + w, b * bw + 2 * w] = 1.0
    return jnp.asarray(s)


def _pick_first_matrix(nb, bw):
    """E @ x picks column w == 0 of each batch block -> (nb, C)."""
    s = np.zeros((nb, nb * bw), np.float32)
    for b in range(nb):
        s[b, b * bw] = 1.0
    return jnp.asarray(s)


# ----------------------------------------------------------------------------
# Fused Pallas kernel
# ----------------------------------------------------------------------------
def _conv_row(x0, x1, taps, bias, shift):
    """One output row of a 2x2 'valid' conv + ReLU.

    x0, x1 : rows h and h+1, shape (B*bw, Cin); taps : 4 x (Cin, Cout) in
    (dh, dw) order; shift : within-block +1 row-shift matrix.  Output column
    w == bw-1 of each batch block is garbage (never read as valid)."""
    f32 = jnp.float32
    x0s = jnp.dot(shift, x0, preferred_element_type=f32)
    x1s = jnp.dot(shift, x1, preferred_element_type=f32)
    acc = jnp.dot(x0, taps[0], preferred_element_type=f32)
    acc = acc + jnp.dot(x0s, taps[1], preferred_element_type=f32)
    acc = acc + jnp.dot(x1, taps[2], preferred_element_type=f32)
    acc = acc + jnp.dot(x1s, taps[3], preferred_element_type=f32)
    return jnp.maximum(acc + bias, 0.0)


def _ac_kernel(obs_ref, s1_ref, ps_ref, s2_ref, e0_ref,
               w1_ref, b1_ref, w2_ref, b2_ref, w3_ref, b3_ref,
               wh1_ref, bh1_ref, wh2_ref, bh2_ref, out_ref, *, H, W):
    f32 = jnp.float32
    Hp, Wp = (H - 1) // 2, (W - 1) // 2          # pooled spatial dims
    Hc2 = Hp - 1                                 # conv2 output height
    Hc3, Wc3 = Hp - 2, Wp - 2                    # conv3 output dims

    s1 = s1_ref[...]        # (B*W,  B*W)  shift by +1 within width-W blocks
    ps = ps_ref[...]        # (B*Wp, B*W)  pool column picker (stride 2)
    s2 = s2_ref[...]        # (B*Wp, B*Wp) shift by +1 within width-Wp blocks
    e0 = e0_ref[...]        # (B,    B*Wp) picks w == 0 of each block

    w1 = [w1_ref[t] for t in range(4)]
    w2 = [w2_ref[t] for t in range(4)]
    w3 = [w3_ref[t] for t in range(4)]
    b1, b2, b3 = b1_ref[...], b2_ref[...], b3_ref[...]

    # conv1 (3->16) + ReLU fused with the 2x2/stride-2 max-pool; only the
    # pooled rows (fully valid, (B*Wp, 16)) are kept live.
    pooled = []
    for hp in range(Hp):
        c1a = _conv_row(obs_ref[2 * hp], obs_ref[2 * hp + 1], w1, b1, s1)
        c1b = _conv_row(obs_ref[2 * hp + 1], obs_ref[2 * hp + 2], w1, b1, s1)
        m = jnp.maximum(c1a, c1b)                                        # max over window rows
        m = jnp.maximum(m, jnp.dot(s1, m, preferred_element_type=f32))   # max over cols w, w+1
        pooled.append(jnp.dot(ps, m, preferred_element_type=f32))        # compact to width Wp

    # conv2 (16->32) and conv3 (32->64), ReLU, all in VMEM/vregs.
    c2 = [_conv_row(pooled[h], pooled[h + 1], w2, b2, s2) for h in range(Hc2)]
    c3 = [_conv_row(c2[h], c2[h + 1], w3, b3, s2) for h in range(Hc3)]

    # embedding (B, Hc3*Wc3*64), flattened in (h, w, c) order.
    tiles = []
    for h in range(Hc3):
        cur = c3[h]
        for w in range(Wc3):
            tiles.append(jnp.dot(e0, cur, preferred_element_type=f32))   # (B, 64)
            if w + 1 < Wc3:
                cur = jnp.dot(s2, cur, preferred_element_type=f32)
    emb = tiles[0] if len(tiles) == 1 else jnp.concatenate(tiles, axis=-1)

    # fused actor/critic heads: one lane-dense (emb,128) matmul + tanh, then a
    # block-diagonal (128,4) matmul -> columns [logits(3) | value(1)].
    hcat = jnp.tanh(jnp.dot(emb, wh1_ref[...], preferred_element_type=f32)
                    + bh1_ref[...])
    out = jnp.dot(hcat, wh2_ref[...], preferred_element_type=f32) + bh2_ref[...]
    logits = out[:, 0:3]
    mx = jnp.max(logits, axis=-1, keepdims=True)
    lse = mx + jnp.log(jnp.sum(jnp.exp(logits - mx), axis=-1, keepdims=True))
    out_ref[:, 0:3] = logits - lse
    out_ref[:, 3:4] = out[:, 3:4]


# ----------------------------------------------------------------------------
# Host wrapper: one pallas_call for the whole forward pass
# ----------------------------------------------------------------------------
def ac_forward(obs, params):
    """obs: (B, n, m, 3) float32 NHWC.  Returns (log_probs (B,3), value (B,))."""
    B, H, W, C = obs.shape
    Hp, Wp = (H - 1) // 2, (W - 1) // 2
    assert Hp >= 3 and Wp >= 3, "observation too small for this architecture"

    # (B,H,W,C) -> (H, B*W, C): rows of each height slice are (batch, width).
    obs_r = jnp.transpose(obs, (1, 0, 2, 3)).reshape(H, B * W, C)

    s1 = _shift_matrix(B, W)
    ps = _pool_pick_matrix(B, W, Wp)
    s2 = _shift_matrix(B, Wp)
    e0 = _pick_first_matrix(B, Wp)

    # fused head parameters
    ah = params["wa1"].shape[1]
    ch = params["wc1"].shape[1]
    wh1 = jnp.concatenate([params["wa1"], params["wc1"]], axis=1)     # (emb, 128)
    bh1 = jnp.concatenate([params["ba1"], params["bc1"]])[None, :]    # (1, 128)
    wh2 = jnp.zeros((ah + ch, 4), jnp.float32)
    wh2 = wh2.at[:ah, 0:3].set(params["wa2"]).at[ah:, 3:4].set(params["wc2"])
    bh2 = jnp.concatenate([params["ba2"], params["bc2"]])[None, :]    # (1, 4)

    args = (obs_r, s1, ps, s2, e0,
            params["w1"], params["b1"][None, :],
            params["w2"], params["b2"][None, :],
            params["w3"], params["b3"][None, :],
            wh1, bh1, wh2, bh2)
    in_specs = [pl.BlockSpec(a.shape, lambda i, n=a.ndim: (0,) * n) for a in args]

    out = pl.pallas_call(
        functools.partial(_ac_kernel, H=H, W=W),
        out_shape=jax.ShapeDtypeStruct((B, 4), jnp.float32),
        grid=(1,),
        in_specs=in_specs,
        out_specs=pl.BlockSpec((B, 4), lambda i: (0, 0)),
        compiler_params=pltpu.CompilerParams(
            dimension_semantics=("arbitrary",)),
    )(*args)
    # TODO(synk): torch.distributions.Categorical has no Pallas equivalent; we
    # return its defining log-probabilities (log_softmax of the actor logits).
    return out[:, :3], out[:, 3]


# ----------------------------------------------------------------------------
# Deterministic synthetic parameters (shapes from ACModel.__init__)
# ----------------------------------------------------------------------------
def init_params(key, n, m):
    emb_size = ((n - 1) // 2 - 2) * ((m - 1) // 2 - 2) * 64
    ks = jax.random.split(key, 10)

    def conv_w(k, cin, cout):
        fan_in = 4 * cin
        bound = 1.0 / np.sqrt(fan_in)
        w = jax.random.uniform(k, (2, 2, cin, cout), jnp.float32, -bound, bound)
        return w.reshape(4, cin, cout)          # (kh*kw, cin, cout), HWIO order

    def conv_b(k, cout, fan_in):
        bound = 1.0 / np.sqrt(fan_in)
        return jax.random.uniform(k, (cout,), jnp.float32, -bound, bound)

    def linear_w(k, fin, fout):
        # initialize_parameters: N(0,1), each output row L2-normalized; bias 0
        w = jax.random.normal(k, (fout, fin), jnp.float32)
        w = w / jnp.sqrt(jnp.sum(w * w, axis=1, keepdims=True))
        return w.T                               # stored as (in, out) for x @ w

    p = {}
    p["w1"] = conv_w(ks[0], 3, 16);   p["b1"] = conv_b(ks[1], 16, 12)
    p["w2"] = conv_w(ks[2], 16, 32);  p["b2"] = conv_b(ks[3], 32, 64)
    p["w3"] = conv_w(ks[4], 32, 64);  p["b3"] = conv_b(ks[5], 64, 128)
    p["wa1"] = linear_w(ks[6], emb_size, 64); p["ba1"] = jnp.zeros((64,), jnp.float32)
    p["wa2"] = linear_w(ks[7], 64, 3);        p["ba2"] = jnp.zeros((3,), jnp.float32)
    p["wc1"] = linear_w(ks[8], emb_size, 64); p["bc1"] = jnp.zeros((64,), jnp.float32)
    p["wc2"] = linear_w(ks[9], 64, 1);        p["bc2"] = jnp.zeros((1,), jnp.float32)
    return p


# ----------------------------------------------------------------------------
# Pure-JAX reference (different code path) for correctness check
# ----------------------------------------------------------------------------
def ac_forward_ref(obs, params):
    def conv_relu(x, w4, b, cin, cout):
        w = w4.reshape(2, 2, cin, cout)
        y = lax.conv_general_dilated(x, w, (1, 1), "VALID",
                                     dimension_numbers=("NHWC", "HWIO", "NHWC"))
        return jnp.maximum(y + b, 0.0)

    x = conv_relu(obs, params["w1"], params["b1"], 3, 16)
    x = lax.reduce_window(x, -jnp.inf, lax.max, (1, 2, 2, 1), (1, 2, 2, 1), "VALID")
    x = conv_relu(x, params["w2"], params["b2"], 16, 32)
    x = conv_relu(x, params["w3"], params["b3"], 32, 64)
    emb = x.reshape(x.shape[0], -1)
    ha = jnp.tanh(emb @ params["wa1"] + params["ba1"])
    logp = jax.nn.log_softmax(ha @ params["wa2"] + params["ba2"], axis=1)
    hc = jnp.tanh(emb @ params["wc1"] + params["bc1"])
    val = (hc @ params["wc2"] + params["bc2"])[:, 0]
    return logp, val


if __name__ == "__main__":
    B, n, m = 4, 8, 8      # obs_space['image'] = (8, 8, 3) -> embedding_size = 64
    key = jax.random.PRNGKey(0)
    k_obs, k_par = jax.random.split(key)
    obs = jax.random.uniform(k_obs, (B, n, m, 3), jnp.float32)
    params = init_params(k_par, n, m)

    logp, value = jax.jit(ac_forward)(obs, params)
    jax.block_until_ready((logp, value))

    logp_ref, value_ref = ac_forward_ref(obs, params)
    assert logp.shape == (B, 3) and value.shape == (B,)
    assert jnp.allclose(logp, logp_ref, atol=2e-4, rtol=2e-4)
    assert jnp.allclose(value, value_ref, atol=2e-4, rtol=2e-4)
    print("KERNEL_OK")
</pallas_src>

<mosaic_0001>
module attributes {stable_mosaic.version = 11 : i64} {
  func.func @_ac_kernel(%arg0: i32, %arg1: memref<8x32x3xf32, #tpu.memory_space<vmem>>, %arg2: memref<32x32xf32, #tpu.memory_space<vmem>>, %arg3: memref<12x32xf32, #tpu.memory_space<vmem>>, %arg4: memref<12x12xf32, #tpu.memory_space<vmem>>, %arg5: memref<4x12xf32, #tpu.memory_space<vmem>>, %arg6: memref<4x3x16xf32, #tpu.memory_space<vmem>>, %arg7: memref<1x16xf32, #tpu.memory_space<vmem>>, %arg8: memref<4x16x32xf32, #tpu.memory_space<vmem>>, %arg9: memref<1x32xf32, #tpu.memory_space<vmem>>, %arg10: memref<4x32x64xf32, #tpu.memory_space<vmem>>, %arg11: memref<1x64xf32, #tpu.memory_space<vmem>>, %arg12: memref<64x128xf32, #tpu.memory_space<vmem>>, %arg13: memref<1x128xf32, #tpu.memory_space<vmem>>, %arg14: memref<128x4xf32, #tpu.memory_space<vmem>>, %arg15: memref<1x4xf32, #tpu.memory_space<vmem>>, %arg16: memref<4x4xf32, #tpu.memory_space<vmem>>) attributes {dimension_semantics = [#tpu.dimension_semantics<arbitrary>], iteration_bounds = array<i64: 1>, scalar_prefetch = 0 : i64, scratch_operands = 0 : i64, tpu.core_type = #tpu.core_type<tc>, window_params = [{pipeline_mode = #tpu.pipeline_mode<synchronous>, transform_indices = @transform_0, window_bounds = array<i64: 8, 32, 3>}, {pipeline_mode = #tpu.pipeline_mode<synchronous>, transform_indices = @transform_1, window_bounds = array<i64: 32, 32>}, {pipeline_mode = #tpu.pipeline_mode<synchronous>, transform_indices = @transform_2, window_bounds = array<i64: 12, 32>}, {pipeline_mode = #tpu.pipeline_mode<synchronous>, transform_indices = @transform_3, window_bounds = array<i64: 12, 12>}, {pipeline_mode = #tpu.pipeline_mode<synchronous>, transform_indices = @transform_4, window_bounds = array<i64: 4, 12>}, {pipeline_mode = #tpu.pipeline_mode<synchronous>, transform_indices = @transform_5, window_bounds = array<i64: 4, 3, 16>}, {pipeline_mode = #tpu.pipeline_mode<synchronous>, transform_indices = @transform_6, window_bounds = array<i64: 1, 16>}, {pipeline_mode = #tpu.pipeline_mode<synchronous>, transform_indices = @transform_7, window_bounds = array<i64: 4, 16, 32>}, {pipeline_mode = #tpu.pipeline_mode<synchronous>, transform_indices = @transform_8, window_bounds = array<i64: 1, 32>}, {pipeline_mode = #tpu.pipeline_mode<synchronous>, transform_indices = @transform_9, window_bounds = array<i64: 4, 32, 64>}, {pipeline_mode = #tpu.pipeline_mode<synchronous>, transform_indices = @transform_10, window_bounds = array<i64: 1, 64>}, {pipeline_mode = #tpu.pipeline_mode<synchronous>, transform_indices = @transform_11, window_bounds = array<i64: 64, 128>}, {pipeline_mode = #tpu.pipeline_mode<synchronous>, transform_indices = @transform_12, window_bounds = array<i64: 1, 128>}, {pipeline_mode = #tpu.pipeline_mode<synchronous>, transform_indices = @transform_13, window_bounds = array<i64: 128, 4>}, {pipeline_mode = #tpu.pipeline_mode<synchronous>, transform_indices = @transform_14, window_bounds = array<i64: 1, 4>}, {pipeline_mode = #tpu.pipeline_mode<synchronous>, transform_indices = @transform_15, window_bounds = array<i64: 4, 4>}]} {
    %c0 = arith.constant 0 : index
    %c0_0 = arith.constant 0 : index
    %0 = vector.load %arg2[%c0, %c0_0] : memref<32x32xf32, #tpu.memory_space<vmem>>, vector<32x32xf32>
    %c0_1 = arith.constant 0 : index
    %c0_2 = arith.constant 0 : index
    %1 = vector.load %arg3[%c0_1, %c0_2] : memref<12x32xf32, #tpu.memory_space<vmem>>, vector<12x32xf32>
    %c0_3 = arith.constant 0 : index
    %c0_4 = arith.constant 0 : index
    %2 = vector.load %arg4[%c0_3, %c0_4] : memref<12x12xf32, #tpu.memory_space<vmem>>, vector<12x12xf32>
    %c0_5 = arith.constant 0 : index
    %c0_6 = arith.constant 0 : index
    %3 = vector.load %arg5[%c0_5, %c0_6] : memref<4x12xf32, #tpu.memory_space<vmem>>, vector<4x12xf32>
    %c0_7 = arith.constant 0 : index
    %c0_8 = arith.constant 0 : index
    %c0_9 = arith.constant 0 : index
    %4 = vector.load %arg6[%c0_7, %c0_8, %c0_9] : memref<4x3x16xf32, #tpu.memory_space<vmem>>, vector<1x3x16xf32>
    %5 = vector.shape_cast %4 : vector<1x3x16xf32> to vector<3x16xf32>
    %c1 = arith.constant 1 : index
    %c0_10 = arith.constant 0 : index
    %c0_11 = arith.constant 0 : index
    %6 = vector.load %arg6[%c1, %c0_10, %c0_11] : memref<4x3x16xf32, #tpu.memory_space<vmem>>, vector<1x3x16xf32>
    %7 = vector.shape_cast %6 : vector<1x3x16xf32> to vector<3x16xf32>
    %c2 = arith.constant 2 : index
    %c0_12 = arith.constant 0 : index
    %c0_13 = arith.constant 0 : index
    %8 = vector.load %arg6[%c2, %c0_12, %c0_13] : memref<4x3x16xf32, #tpu.memory_space<vmem>>, vector<1x3x16xf32>
    %9 = vector.shape_cast %8 : vector<1x3x16xf32> to vector<3x16xf32>
    %c3 = arith.constant 3 : index
    %c0_14 = arith.constant 0 : index
    %c0_15 = arith.constant 0 : index
    %10 = vector.load %arg6[%c3, %c0_14, %c0_15] : memref<4x3x16xf32, #tpu.memory_space<vmem>>, vector<1x3x16xf32>
    %11 = vector.shape_cast %10 : vector<1x3x16xf32> to vector<3x16xf32>
    %c0_16 = arith.constant 0 : index
    %c0_17 = arith.constant 0 : index
    %c0_18 = arith.constant 0 : index
    %12 = vector.load %arg8[%c0_16, %c0_17, %c0_18] : memref<4x16x32xf32, #tpu.memory_space<vmem>>, vector<1x16x32xf32>
    %13 = vector.shape_cast %12 : vector<1x16x32xf32> to vector<16x32xf32>
    %c1_19 = arith.constant 1 : index
    %c0_20 = arith.constant 0 : index
    %c0_21 = arith.constant 0 : index
    %14 = vector.load %arg8[%c1_19, %c0_20, %c0_21] : memref<4x16x32xf32, #tpu.memory_space<vmem>>, vector<1x16x32xf32>
    %15 = vector.shape_cast %14 : vector<1x16x32xf32> to vector<16x32xf32>
    %c2_22 = arith.constant 2 : index
    %c0_23 = arith.constant 0 : index
    %c0_24 = arith.constant 0 : index
    %16 = vector.load %arg8[%c2_22, %c0_23, %c0_24] : memref<4x16x32xf32, #tpu.memory_space<vmem>>, vector<1x16x32xf32>
    %17 = vector.shape_cast %16 : vector<1x16x32xf32> to vector<16x32xf32>
    %c3_25 = arith.constant 3 : index
    %c0_26 = arith.constant 0 : index
    %c0_27 = arith.constant 0 : index
    %18 = vector.load %arg8[%c3_25, %c0_26, %c0_27] : memref<4x16x32xf32, #tpu.memory_space<vmem>>, vector<1x16x32xf32>
    %19 = vector.shape_cast %18 : vector<1x16x32xf32> to vector<16x32xf32>
    %c0_28 = arith.constant 0 : index
    %c0_29 = arith.constant 0 : index
    %c0_30 = arith.constant 0 : index
    %20 = vector.load %arg10[%c0_28, %c0_29, %c0_30] : memref<4x32x64xf32, #tpu.memory_space<vmem>>, vector<1x32x64xf32>
    %21 = vector.shape_cast %20 : vector<1x32x64xf32> to vector<32x64xf32>
    %c1_31 = arith.constant 1 : index
    %c0_32 = arith.constant 0 : index
    %c0_33 = arith.constant 0 : index
    %22 = vector.load %arg10[%c1_31, %c0_32, %c0_33] : memref<4x32x64xf32, #tpu.memory_space<vmem>>, vector<1x32x64xf32>
    %23 = vector.shape_cast %22 : vector<1x32x64xf32> to vector<32x64xf32>
    %c2_34 = arith.constant 2 : index
    %c0_35 = arith.constant 0 : index
    %c0_36 = arith.constant 0 : index
    %24 = vector.load %arg10[%c2_34, %c0_35, %c0_36] : memref<4x32x64xf32, #tpu.memory_space<vmem>>, vector<1x32x64xf32>
    %25 = vector.shape_cast %24 : vector<1x32x64xf32> to vector<32x64xf32>
    %c3_37 = arith.constant 3 : index
    %c0_38 = arith.constant 0 : index
    %c0_39 = arith.constant 0 : index
    %26 = vector.load %arg10[%c3_37, %c0_38, %c0_39] : memref<4x32x64xf32, #tpu.memory_space<vmem>>, vector<1x32x64xf32>
    %27 = vector.shape_cast %26 : vector<1x32x64xf32> to vector<32x64xf32>
    %c0_40 = arith.constant 0 : index
    %c0_41 = arith.constant 0 : index
    %28 = vector.load %arg7[%c0_40, %c0_41] : memref<1x16xf32, #tpu.memory_space<vmem>>, vector<1x16xf32>
    %c0_42 = arith.constant 0 : index
    %c0_43 = arith.constant 0 : index
    %29 = vector.load %arg9[%c0_42, %c0_43] : memref<1x32xf32, #tpu.memory_space<vmem>>, vector<1x32xf32>
    %c0_44 = arith.constant 0 : index
    %c0_45 = arith.constant 0 : index
    %30 = vector.load %arg11[%c0_44, %c0_45] : memref<1x64xf32, #tpu.memory_space<vmem>>, vector<1x64xf32>
    %c0_46 = arith.constant 0 : index
    %c0_47 = arith.constant 0 : index
    %c0_48 = arith.constant 0 : index
    %31 = vector.load %arg1[%c0_46, %c0_47, %c0_48] : memref<8x32x3xf32, #tpu.memory_space<vmem>>, vector<1x32x3xf32>
    %32 = vector.shape_cast %31 : vector<1x32x3xf32> to vector<32x3xf32>
    %c1_49 = arith.constant 1 : index
    %c0_50 = arith.constant 0 : index
    %c0_51 = arith.constant 0 : index
    %33 = vector.load %arg1[%c1_49, %c0_50, %c0_51] : memref<8x32x3xf32, #tpu.memory_space<vmem>>, vector<1x32x3xf32>
    %34 = vector.shape_cast %33 : vector<1x32x3xf32> to vector<32x3xf32>
    %cst = arith.constant dense<0.000000e+00> : vector<32x3xf32>
    %35 = tpu.matmul %0, %32, %cst {dimension_numbers = #tpu.dot_dimension_numbers<[1], [0], [0], [1], [0, 0, 1, 1], [], []>} : vector<32x32xf32>, vector<32x3xf32>, vector<32x3xf32> -> vector<32x3xf32>
    %cst_52 = arith.constant dense<0.000000e+00> : vector<32x3xf32>
    %36 = tpu.matmul %0, %34, %cst_52 {dimension_numbers = #tpu.dot_dimension_numbers<[1], [0], [0], [1], [0, 0, 1, 1], [], []>} : vector<32x32xf32>, vector<32x3xf32>, vector<32x3xf32> -> vector<32x3xf32>
    %cst_53 = arith.constant dense<0.000000e+00> : vector<32x16xf32>
    %37 = tpu.matmul %32, %5, %cst_53 {dimension_numbers = #tpu.dot_dimension_numbers<[1], [0], [0], [1], [0, 0, 1, 1], [], []>} : vector<32x3xf32>, vector<3x16xf32>, vector<32x16xf32> -> vector<32x16xf32>
    %cst_54 = arith.constant dense<0.000000e+00> : vector<32x16xf32>
    %38 = tpu.matmul %35, %7, %cst_54 {dimension_numbers = #tpu.dot_dimension_numbers<[1], [0], [0], [1], [0, 0, 1, 1], [], []>} : vector<32x3xf32>, vector<3x16xf32>, vector<32x16xf32> -> vector<32x16xf32>
    %39 = arith.addf %37, %38 : vector<32x16xf32>
    %cst_55 = arith.constant dense<0.000000e+00> : vector<32x16xf32>
    %40 = tpu.matmul %34, %9, %cst_55 {dimension_numbers = #tpu.dot_dimension_numbers<[1], [0], [0], [1], [0, 0, 1, 1], [], []>} : vector<32x3xf32>, vector<3x16xf32>, vector<32x16xf32> -> vector<32x16xf32>
    %41 = arith.addf %39, %40 : vector<32x16xf32>
    %cst_56 = arith.constant dense<0.000000e+00> : vector<32x16xf32>
    %42 = tpu.matmul %36, %11, %cst_56 {dimension_numbers = #tpu.dot_dimension_numbers<[1], [0], [0], [1], [0, 0, 1, 1], [], []>} : vector<32x3xf32>, vector<3x16xf32>, vector<32x16xf32> -> vector<32x16xf32>
    %43 = arith.addf %41, %42 : vector<32x16xf32>
    %44 = vector.broadcast %28 : vector<1x16xf32> to vector<32x16xf32>
    %45 = arith.addf %43, %44 : vector<32x16xf32>
    %cst_57 = arith.constant 0.000000e+00 : f32
    %46 = vector.broadcast %cst_57 : f32 to vector<32x16xf32>
    %47 = arith.maximumf %45, %46 : vector<32x16xf32>
    %c1_58 = arith.constant 1 : index
    %c0_59 = arith.constant 0 : index
    %c0_60 = arith.constant 0 : index
    %48 = vector.load %arg1[%c1_58, %c0_59, %c0_60] : memref<8x32x3xf32, #tpu.memory_space<vmem>>, vector<1x32x3xf32>
    %49 = vector.shape_cast %48 : vector<1x32x3xf32> to vector<32x3xf32>
    %c2_61 = arith.constant 2 : index
    %c0_62 = arith.constant 0 : index
    %c0_63 = arith.constant 0 : index
    %50 = vector.load %arg1[%c2_61, %c0_62, %c0_63] : memref<8x32x3xf32, #tpu.memory_space<vmem>>, vector<1x32x3xf32>
    %51 = vector.shape_cast %50 : vector<1x32x3xf32> to vector<32x3xf32>
    %cst_64 = arith.constant dense<0.000000e+00> : vector<32x3xf32>
    %52 = tpu.matmul %0, %49, %cst_64 {dimension_numbers = #tpu.dot_dimension_numbers<[1], [0], [0], [1], [0, 0, 1, 1], [], []>} : vector<32x32xf32>, vector<32x3xf32>, vector<32x3xf32> -> vector<32x3xf32>
    %cst_65 = arith.constant dense<0.000000e+00> : vector<32x3xf32>
    %53 = tpu.matmul %0, %51, %cst_65 {dimension_numbers = #tpu.dot_dimension_numbers<[1], [0], [0], [1], [0, 0, 1, 1], [], []>} : vector<32x32xf32>, vector<32x3xf32>, vector<32x3xf32> -> vector<32x3xf32>
    %cst_66 = arith.constant dense<0.000000e+00> : vector<32x16xf32>
    %54 = tpu.matmul %49, %5, %cst_66 {dimension_numbers = #tpu.dot_dimension_numbers<[1], [0], [0], [1], [0, 0, 1, 1], [], []>} : vector<32x3xf32>, vector<3x16xf32>, vector<32x16xf32> -> vector<32x16xf32>
    %cst_67 = arith.constant dense<0.000000e+00> : vector<32x16xf32>
    %55 = tpu.matmul %52, %7, %cst_67 {dimension_numbers = #tpu.dot_dimension_numbers<[1], [0], [0], [1], [0, 0, 1, 1], [], []>} : vector<32x3xf32>, vector<3x16xf32>, vector<32x16xf32> -> vector<32x16xf32>
    %56 = arith.addf %54, %55 : vector<32x16xf32>
    %cst_68 = arith.constant dense<0.000000e+00> : vector<32x16xf32>
    %57 = tpu.matmul %51, %9, %cst_68 {dimension_numbers = #tpu.dot_dimension_numbers<[1], [0], [0], [1], [0, 0, 1, 1], [], []>} : vector<32x3xf32>, vector<3x16xf32>, vector<32x16xf32> -> vector<32x16xf32>
    %58 = arith.addf %56, %57 : vector<32x16xf32>
    %cst_69 = arith.constant dense<0.000000e+00> : vector<32x16xf32>
    %59 = tpu.matmul %53, %11, %cst_69 {dimension_numbers = #tpu.dot_dimension_numbers<[1], [0], [0], [1], [0, 0, 1, 1], [], []>} : vector<32x3xf32>, vector<3x16xf32>, vector<32x16xf32> -> vector<32x16xf32>
    %60 = arith.addf %58, %59 : vector<32x16xf32>
    %61 = vector.broadcast %28 : vector<1x16xf32> to vector<32x16xf32>
    %62 = arith.addf %60, %61 : vector<32x16xf32>
    %cst_70 = arith.constant 0.000000e+00 : f32
    %63 = vector.broadcast %cst_70 : f32 to vector<32x16xf32>
    %64 = arith.maximumf %62, %63 : vector<32x16xf32>
    %65 = arith.maximumf %47, %64 : vector<32x16xf32>
    %cst_71 = arith.constant dense<0.000000e+00> : vector<32x16xf32>
    %66 = tpu.matmul %0, %65, %cst_71 {dimension_numbers = #tpu.dot_dimension_numbers<[1], [0], [0], [1], [0, 0, 1, 1], [], []>} : vector<32x32xf32>, vector<32x16xf32>, vector<32x16xf32> -> vector<32x16xf32>
    %67 = arith.maximumf %65, %66 : vector<32x16xf32>
    %cst_72 = arith.constant dense<0.000000e+00> : vector<12x16xf32>
    %68 = tpu.matmul %1, %67, %cst_72 {dimension_numbers = #tpu.dot_dimension_numbers<[1], [0], [0], [1], [0, 0, 1, 1], [], []>} : vector<12x32xf32>, vector<32x16xf32>, vector<12x16xf32> -> vector<12x16xf32>
    %c2_73 = arith.constant 2 : index
    %c0_74 = arith.constant 0 : index
    %c0_75 = arith.constant 0 : index
    %69 = vector.load %arg1[%c2_73, %c0_74, %c0_75] : memref<8x32x3xf32, #tpu.memory_space<vmem>>, vector<1x32x3xf32>
    %70 = vector.shape_cast %69 : vector<1x32x3xf32> to vector<32x3xf32>
    %c3_76 = arith.constant 3 : index
    %c0_77 = arith.constant 0 : index
    %c0_78 = arith.constant 0 : index
    %71 = vector.load %arg1[%c3_76, %c0_77, %c0_78] : memref<8x32x3xf32, #tpu.memory_space<vmem>>, vector<1x32x3xf32>
    %72 = vector.shape_cast %71 : vector<1x32x3xf32> to vector<32x3xf32>
    %cst_79 = arith.constant dense<0.000000e+00> : vector<32x3xf32>
    %73 = tpu.matmul %0, %70, %cst_79 {dimension_numbers = #tpu.dot_dimension_numbers<[1], [0], [0], [1], [0, 0, 1, 1], [], []>} : vector<32x32xf32>, vector<32x3xf32>, vector<32x3xf32> -> vector<32x3xf32>
    %cst_80 = arith.constant dense<0.000000e+00> : vector<32x3xf32>
    %74 = tpu.matmul %0, %72, %cst_80 {dimension_numbers = #tpu.dot_dimension_numbers<[1], [0], [0], [1], [0, 0, 1, 1], [], []>} : vector<32x32xf32>, vector<32x3xf32>, vector<32x3xf32> -> vector<32x3xf32>
    %cst_81 = arith.constant dense<0.000000e+00> : vector<32x16xf32>
    %75 = tpu.matmul %70, %5, %cst_81 {dimension_numbers = #tpu.dot_dimension_numbers<[1], [0], [0], [1], [0, 0, 1, 1], [], []>} : vector<32x3xf32>, vector<3x16xf32>, vector<32x16xf32> -> vector<32x16xf32>
    %cst_82 = arith.constant dense<0.000000e+00> : vector<32x16xf32>
    %76 = tpu.matmul %73, %7, %cst_82 {dimension_numbers = #tpu.dot_dimension_numbers<[1], [0], [0], [1], [0, 0, 1, 1], [], []>} : vector<32x3xf32>, vector<3x16xf32>, vector<32x16xf32> -> vector<32x16xf32>
    %77 = arith.addf %75, %76 : vector<32x16xf32>
    %cst_83 = arith.constant dense<0.000000e+00> : vector<32x16xf32>
    %78 = tpu.matmul %72, %9, %cst_83 {dimension_numbers = #tpu.dot_dimension_numbers<[1], [0], [0], [1], [0, 0, 1, 1], [], []>} : vector<32x3xf32>, vector<3x16xf32>, vector<32x16xf32> -> vector<32x16xf32>
    %79 = arith.addf %77, %78 : vector<32x16xf32>
    %cst_84 = arith.constant dense<0.000000e+00> : vector<32x16xf32>
    %80 = tpu.matmul %74, %11, %cst_84 {dimension_numbers = #tpu.dot_dimension_numbers<[1], [0], [0], [1], [0, 0, 1, 1], [], []>} : vector<32x3xf32>, vector<3x16xf32>, vector<32x16xf32> -> vector<32x16xf32>
    %81 = arith.addf %79, %80 : vector<32x16xf32>
    %82 = vector.broadcast %28 : vector<1x16xf32> to vector<32x16xf32>
    %83 = arith.addf %81, %82 : vector<32x16xf32>
    %cst_85 = arith.constant 0.000000e+00 : f32
    %84 = vector.broadcast %cst_85 : f32 to vector<32x16xf32>
    %85 = arith.maximumf %83, %84 : vector<32x16xf32>
    %c3_86 = arith.constant 3 : index
    %c0_87 = arith.constant 0 : index
    %c0_88 = arith.constant 0 : index
    %86 = vector.load %arg1[%c3_86, %c0_87, %c0_88] : memref<8x32x3xf32, #tpu.memory_space<vmem>>, vector<1x32x3xf32>
    %87 = vector.shape_cast %86 : vector<1x32x3xf32> to vector<32x3xf32>
    %c4 = arith.constant 4 : index
    %c0_89 = arith.constant 0 : index
    %c0_90 = arith.constant 0 : index
    %88 = vector.load %arg1[%c4, %c0_89, %c0_90] : memref<8x32x3xf32, #tpu.memory_space<vmem>>, vector<1x32x3xf32>
    %89 = vector.shape_cast %88 : vector<1x32x3xf32> to vector<32x3xf32>
    %cst_91 = arith.constant dense<0.000000e+00> : vector<32x3xf32>
    %90 = tpu.matmul %0, %87, %cst_91 {dimension_numbers = #tpu.dot_dimension_numbers<[1], [0], [0], [1], [0, 0, 1, 1], [], []>} : vector<32x32xf32>, vector<32x3xf32>, vector<32x3xf32> -> vector<32x3xf32>
    %cst_92 = arith.constant dense<0.000000e+00> : vector<32x3xf32>
    %91 = tpu.matmul %0, %89, %cst_92 {dimension_numbers = #tpu.dot_dimension_numbers<[1], [0], [0], [1], [0, 0, 1, 1], [], []>} : vector<32x32xf32>, vector<32x3xf32>, vector<32x3xf32> -> vector<32x3xf32>
    %cst_93 = arith.constant dense<0.000000e+00> : vector<32x16xf32>
    %92 = tpu.matmul %87, %5, %cst_93 {dimension_numbers = #tpu.dot_dimension_numbers<[1], [0], [0], [1], [0, 0, 1, 1], [], []>} : vector<32x3xf32>, vector<3x16xf32>, vector<32x16xf32> -> vector<32x16xf32>
    %cst_94 = arith.constant dense<0.000000e+00> : vector<32x16xf32>
    %93 = tpu.matmul %90, %7, %cst_94 {dimension_numbers = #tpu.dot_dimension_numbers<[1], [0], [0], [1], [0, 0, 1, 1], [], []>} : vector<32x3xf32>, vector<3x16xf32>, vector<32x16xf32> -> vector<32x16xf32>
    %94 = arith.addf %92, %93 : vector<32x16xf32>
    %cst_95 = arith.constant dense<0.000000e+00> : vector<32x16xf32>
    %95 = tpu.matmul %89, %9, %cst_95 {dimension_numbers = #tpu.dot_dimension_numbers<[1], [0], [0], [1], [0, 0, 1, 1], [], []>} : vector<32x3xf32>, vector<3x16xf32>, vector<32x16xf32> -> vector<32x16xf32>
    %96 = arith.addf %94, %95 : vector<32x16xf32>
    %cst_96 = arith.constant dense<0.000000e+00> : vector<32x16xf32>
    %97 = tpu.matmul %91, %11, %cst_96 {dimension_numbers = #tpu.dot_dimension_numbers<[1], [0], [0], [1], [0, 0, 1, 1], [], []>} : vector<32x3xf32>, vector<3x16xf32>, vector<32x16xf32> -> vector<32x16xf32>
    %98 = arith.addf %96, %97 : vector<32x16xf32>
    %99 = vector.broadcast %28 : vector<1x16xf32> to vector<32x16xf32>
    %100 = arith.addf %98, %99 : vector<32x16xf32>
    %cst_97 = arith.constant 0.000000e+00 : f32
    %101 = vector.broadcast %cst_97 : f32 to vector<32x16xf32>
    %102 = arith.maximumf %100, %101 : vector<32x16xf32>
    %103 = arith.maximumf %85, %102 : vector<32x16xf32>
    %cst_98 = arith.constant dense<0.000000e+00> : vector<32x16xf32>
    %104 = tpu.matmul %0, %103, %cst_98 {dimension_numbers = #tpu.dot_dimension_numbers<[1], [0], [0], [1], [0, 0, 1, 1], [], []>} : vector<32x32xf32>, vector<32x16xf32>, vector<32x16xf32> -> vector<32x16xf32>
    %105 = arith.maximumf %103, %104 : vector<32x16xf32>
    %cst_99 = arith.constant dense<0.000000e+00> : vector<12x16xf32>
    %106 = tpu.matmul %1, %105, %cst_99 {dimension_numbers = #tpu.dot_dimension_numbers<[1], [0], [0], [1], [0, 0, 1, 1], [], []>} : vector<12x32xf32>, vector<32x16xf32>, vector<12x16xf32> -> vector<12x16xf32>
    %c4_100 = arith.constant 4 : index
    %c0_101 = arith.constant 0 : index
    %c0_102 = arith.constant 0 : index
    %107 = vector.load %arg1[%c4_100, %c0_101, %c0_102] : memref<8x32x3xf32, #tpu.memory_space<vmem>>, vector<1x32x3xf32>
    %108 = vector.shape_cast %107 : vector<1x32x3xf32> to vector<32x3xf32>
    %c5 = arith.constant 5 : index
    %c0_103 = arith.constant 0 : index
    %c0_104 = arith.constant 0 : index
    %109 = vector.load %arg1[%c5, %c0_103, %c0_104] : memref<8x32x3xf32, #tpu.memory_space<vmem>>, vector<1x32x3xf32>
    %110 = vector.shape_cast %109 : vector<1x32x3xf32> to vector<32x3xf32>
    %cst_105 = arith.constant dense<0.000000e+00> : vector<32x3xf32>
    %111 = tpu.matmul %0, %108, %cst_105 {dimension_numbers = #tpu.dot_dimension_numbers<[1], [0], [0], [1], [0, 0, 1, 1], [], []>} : vector<32x32xf32>, vector<32x3xf32>, vector<32x3xf32> -> vector<32x3xf32>
    %cst_106 = arith.constant dense<0.000000e+00> : vector<32x3xf32>
    %112 = tpu.matmul %0, %110, %cst_106 {dimension_numbers = #tpu.dot_dimension_numbers<[1], [0], [0], [1], [0, 0, 1, 1], [], []>} : vector<32x32xf32>, vector<32x3xf32>, vector<32x3xf32> -> vector<32x3xf32>
    %cst_107 = arith.constant dense<0.000000e+00> : vector<32x16xf32>
    %113 = tpu.matmul %108, %5, %cst_107 {dimension_numbers = #tpu.dot_dimension_numbers<[1], [0], [0], [1], [0, 0, 1, 1], [], []>} : vector<32x3xf32>, vector<3x16xf32>, vector<32x16xf32> -> vector<32x16xf32>
    %cst_108 = arith.constant dense<0.000000e+00> : vector<32x16xf32>
    %114 = tpu.matmul %111, %7, %cst_108 {dimension_numbers = #tpu.dot_dimension_numbers<[1], [0], [0], [1], [0, 0, 1, 1], [], []>} : vector<32x3xf32>, vector<3x16xf32>, vector<32x16xf32> -> vector<32x16xf32>
    %115 = arith.addf %113, %114 : vector<32x16xf32>
    %cst_109 = arith.constant dense<0.000000e+00> : vector<32x16xf32>
    %116 = tpu.matmul %110, %9, %cst_109 {dimension_numbers = #tpu.dot_dimension_numbers<[1], [0], [0], [1], [0, 0, 1, 1], [], []>} : vector<32x3xf32>, vector<3x16xf32>, vector<32x16xf32> -> vector<32x16xf32>
    %117 = arith.addf %115, %116 : vector<32x16xf32>
    %cst_110 = arith.constant dense<0.000000e+00> : vector<32x16xf32>
    %118 = tpu.matmul %112, %11, %cst_110 {dimension_numbers = #tpu.dot_dimension_numbers<[1], [0], [0], [1], [0, 0, 1, 1], [], []>} : vector<32x3xf32>, vector<3x16xf32>, vector<32x16xf32> -> vector<32x16xf32>
    %119 = arith.addf %117, %118 : vector<32x16xf32>
    %120 = vector.broadcast %28 : vector<1x16xf32> to vector<32x16xf32>
    %121 = arith.addf %119, %120 : vector<32x16xf32>
    %cst_111 = arith.constant 0.000000e+00 : f32
    %122 = vector.broadcast %cst_111 : f32 to vector<32x16xf32>
    %123 = arith.maximumf %121, %122 : vector<32x16xf32>
    %c5_112 = arith.constant 5 : index
    %c0_113 = arith.constant 0 : index
    %c0_114 = arith.constant 0 : index
    %124 = vector.load %arg1[%c5_112, %c0_113, %c0_114] : memref<8x32x3xf32, #tpu.memory_space<vmem>>, vector<1x32x3xf32>
    %125 = vector.shape_cast %124 : vector<1x32x3xf32> to vector<32x3xf32>
    %c6 = arith.constant 6 : index
    %c0_115 = arith.constant 0 : index
    %c0_116 = arith.constant 0 : index
    %126 = vector.load %arg1[%c6, %c0_115, %c0_116] : memref<8x32x3xf32, #tpu.memory_space<vmem>>, vector<1x32x3xf32>
    %127 = vector.shape_cast %126 : vector<1x32x3xf32> to vector<32x3xf32>
    %cst_117 = arith.constant dense<0.000000e+00> : vector<32x3xf32>
    %128 = tpu.matmul %0, %125, %cst_117 {dimension_numbers = #tpu.dot_dimension_numbers<[1], [0], [0], [1], [0, 0, 1, 1], [], []>} : vector<32x32xf32>, vector<32x3xf32>, vector<32x3xf32> -> vector<32x3xf32>
    %cst_118 = arith.constant dense<0.000000e+00> : vector<32x3xf32>
    %129 = tpu.matmul %0, %127, %cst_118 {dimension_numbers = #tpu.dot_dimension_numbers<[1], [0], [0], [1], [0, 0, 1, 1], [], []>} : vector<32x32xf32>, vector<32x3xf32>, vector<32x3xf32> -> vector<32x3xf32>
    %cst_119 = arith.constant dense<0.000000e+00> : vector<32x16xf32>
    %130 = tpu.matmul %125, %5, %cst_119 {dimension_numbers = #tpu.dot_dimension_numbers<[1], [0], [0], [1], [0, 0, 1, 1], [], []>} : vector<32x3xf32>, vector<3x16xf32>, vector<32x16xf32> -> vector<32x16xf32>
    %cst_120 = arith.constant dense<0.000000e+00> : vector<32x16xf32>
    %131 = tpu.matmul %128, %7, %cst_120 {dimension_numbers = #tpu.dot_dimension_numbers<[1], [0], [0], [1], [0, 0, 1, 1], [], []>} : vector<32x3xf32>, vector<3x16xf32>, vector<32x16xf32> -> vector<32x16xf32>
    %132 = arith.addf %130, %131 : vector<32x16xf32>
    %cst_121 = arith.constant dense<0.000000e+00> : vector<32x16xf32>
    %133 = tpu.matmul %127, %9, %cst_121 {dimension_numbers = #tpu.dot_dimension_numbers<[1], [0], [0], [1], [0, 0, 1, 1], [], []>} : vector<32x3xf32>, vector<3x16xf32>, vector<32x16xf32> -> vector<32x16xf32>
    %134 = arith.addf %132, %133 : vector<32x16xf32>
    %cst_122 = arith.constant dense<0.000000e+00> : vector<32x16xf32>
    %135 = tpu.matmul %129, %11, %cst_122 {dimension_numbers = #tpu.dot_dimension_numbers<[1], [0], [0], [1], [0, 0, 1, 1], [], []>} : vector<32x3xf32>, vector<3x16xf32>, vector<32x16xf32> -> vector<32x16xf32>
    %136 = arith.addf %134, %135 : vector<32x16xf32>
    %137 = vector.broadcast %28 : vector<1x16xf32> to vector<32x16xf32>
    %138 = arith.addf %136, %137 : vector<32x16xf32>
    %cst_123 = arith.constant 0.000000e+00 : f32
    %139 = vector.broadcast %cst_123 : f32 to vector<32x16xf32>
    %140 = arith.maximumf %138, %139 : vector<32x16xf32>
    %141 = arith.maximumf %123, %140 : vector<32x16xf32>
    %cst_124 = arith.constant dense<0.000000e+00> : vector<32x16xf32>
    %142 = tpu.matmul %0, %141, %cst_124 {dimension_numbers = #tpu.dot_dimension_numbers<[1], [0], [0], [1], [0, 0, 1, 1], [], []>} : vector<32x32xf32>, vector<32x16xf32>, vector<32x16xf32> -> vector<32x16xf32>
    %143 = arith.maximumf %141, %142 : vector<32x16xf32>
    %cst_125 = arith.constant dense<0.000000e+00> : vector<12x16xf32>
    %144 = tpu.matmul %1, %143, %cst_125 {dimension_numbers = #tpu.dot_dimension_numbers<[1], [0], [0], [1], [0, 0, 1, 1], [], []>} : vector<12x32xf32>, vector<32x16xf32>, vector<12x16xf32> -> vector<12x16xf32>
    %cst_126 = arith.constant dense<0.000000e+00> : vector<12x16xf32>
    %145 = tpu.matmul %2, %68, %cst_126 {dimension_numbers = #tpu.dot_dimension_numbers<[1], [0], [0], [1], [0, 0, 1, 1], [], []>} : vector<12x12xf32>, vector<12x16xf32>, vector<12x16xf32> -> vector<12x16xf32>
    %cst_127 = arith.constant dense<0.000000e+00> : vector<12x16xf32>
    %146 = tpu.matmul %2, %106, %cst_127 {dimension_numbers = #tpu.dot_dimension_numbers<[1], [0], [0], [1], [0, 0, 1, 1], [], []>} : vector<12x12xf32>, vector<12x16xf32>, vector<12x16xf32> -> vector<12x16xf32>
    %cst_128 = arith.constant dense<0.000000e+00> : vector<12x32xf32>
    %147 = tpu.matmul %68, %13, %cst_128 {dimension_numbers = #tpu.dot_dimension_numbers<[1], [0], [0], [1], [0, 0, 1, 1], [], []>} : vector<12x16xf32>, vector<16x32xf32>, vector<12x32xf32> -> vector<12x32xf32>
    %cst_129 = arith.constant dense<0.000000e+00> : vector<12x32xf32>
    %148 = tpu.matmul %145, %15, %cst_129 {dimension_numbers = #tpu.dot_dimension_numbers<[1], [0], [0], [1], [0, 0, 1, 1], [], []>} : vector<12x16xf32>, vector<16x32xf32>, vector<12x32xf32> -> vector<12x32xf32>
    %149 = arith.addf %147, %148 : vector<12x32xf32>
    %cst_130 = arith.constant dense<0.000000e+00> : vector<12x32xf32>
    %150 = tpu.matmul %106, %17, %cst_130 {dimension_numbers = #tpu.dot_dimension_numbers<[1], [0], [0], [1], [0, 0, 1, 1], [], []>} : vector<12x16xf32>, vector<16x32xf32>, vector<12x32xf32> -> vector<12x32xf32>
    %151 = arith.addf %149, %150 : vector<12x32xf32>
    %cst_131 = arith.constant dense<0.000000e+00> : vector<12x32xf32>
    %152 = tpu.matmul %146, %19, %cst_131 {dimension_numbers = #tpu.dot_dimension_numbers<[1], [0], [0], [1], [0, 0, 1, 1], [], []>} : vector<12x16xf32>, vector<16x32xf32>, vector<12x32xf32> -> vector<12x32xf32>
    %153 = arith.addf %151, %152 : vector<12x32xf32>
    %154 = vector.broadcast %29 : vector<1x32xf32> to vector<12x32xf32>
    %155 = arith.addf %153, %154 : vector<12x32xf32>
    %cst_132 = arith.constant 0.000000e+00 : f32
    %156 = vector.broadcast %cst_132 : f32 to vector<12x32xf32>
    %157 = arith.maximumf %155, %156 : vector<12x32xf32>
    %cst_133 = arith.constant dense<0.000000e+00> : vector<12x16xf32>
    %158 = tpu.matmul %2, %106, %cst_133 {dimension_numbers = #tpu.dot_dimension_numbers<[1], [0], [0], [1], [0, 0, 1, 1], [], []>} : vector<12x12xf32>, vector<12x16xf32>, vector<12x16xf32> -> vector<12x16xf32>
    %cst_134 = arith.constant dense<0.000000e+00> : vector<12x16xf32>
    %159 = tpu.matmul %2, %144, %cst_134 {dimension_numbers = #tpu.dot_dimension_numbers<[1], [0], [0], [1], [0, 0, 1, 1], [], []>} : vector<12x12xf32>, vector<12x16xf32>, vector<12x16xf32> -> vector<12x16xf32>
    %cst_135 = arith.constant dense<0.000000e+00> : vector<12x32xf32>
    %160 = tpu.matmul %106, %13, %cst_135 {dimension_numbers = #tpu.dot_dimension_numbers<[1], [0], [0], [1], [0, 0, 1, 1], [], []>} : vector<12x16xf32>, vector<16x32xf32>, vector<12x32xf32> -> vector<12x32xf32>
    %cst_136 = arith.constant dense<0.000000e+00> : vector<12x32xf32>
    %161 = tpu.matmul %158, %15, %cst_136 {dimension_numbers = #tpu.dot_dimension_numbers<[1], [0], [0], [1], [0, 0, 1, 1], [], []>} : vector<12x16xf32>, vector<16x32xf32>, vector<12x32xf32> -> vector<12x32xf32>
    %162 = arith.addf %160, %161 : vector<12x32xf32>
    %cst_137 = arith.constant dense<0.000000e+00> : vector<12x32xf32>
    %163 = tpu.matmul %144, %17, %cst_137 {dimension_numbers = #tpu.dot_dimension_numbers<[1], [0], [0], [1], [0, 0, 1, 1], [], []>} : vector<12x16xf32>, vector<16x32xf32>, vector<12x32xf32> -> vector<12x32xf32>
    %164 = arith.addf %162, %163 : vector<12x32xf32>
    %cst_138 = arith.constant dense<0.000000e+00> : vector<12x32xf32>
    %165 = tpu.matmul %159, %19, %cst_138 {dimension_numbers = #tpu.dot_dimension_numbers<[1], [0], [0], [1], [0, 0, 1, 1], [], []>} : vector<12x16xf32>, vector<16x32xf32>, vector<12x32xf32> -> vector<12x32xf32>
    %166 = arith.addf %164, %165 : vector<12x32xf32>
    %167 = vector.broadcast %29 : vector<1x32xf32> to vector<12x32xf32>
    %168 = arith.addf %166, %167 : vector<12x32xf32>
    %cst_139 = arith.constant 0.000000e+00 : f32
    %169 = vector.broadcast %cst_139 : f32 to vector<12x32xf32>
    %170 = arith.maximumf %168, %169 : vector<12x32xf32>
    %cst_140 = arith.constant dense<0.000000e+00> : vector<12x32xf32>
    %171 = tpu.matmul %2, %157, %cst_140 {dimension_numbers = #tpu.dot_dimension_numbers<[1], [0], [0], [1], [0, 0, 1, 1], [], []>} : vector<12x12xf32>, vector<12x32xf32>, vector<12x32xf32> -> vector<12x32xf32>
    %cst_141 = arith.constant dense<0.000000e+00> : vector<12x32xf32>
    %172 = tpu.matmul %2, %170, %cst_141 {dimension_numbers = #tpu.dot_dimension_numbers<[1], [0], [0], [1], [0, 0, 1, 1], [], []>} : vector<12x12xf32>, vector<12x32xf32>, vector<12x32xf32> -> vector<12x32xf32>
    %cst_142 = arith.constant dense<0.000000e+00> : vector<12x64xf32>
    %173 = tpu.matmul %157, %21, %cst_142 {dimension_numbers = #tpu.dot_dimension_numbers<[1], [0], [0], [1], [0, 0, 1, 1], [], []>} : vector<12x32xf32>, vector<32x64xf32>, vector<12x64xf32> -> vector<12x64xf32>
    %cst_143 = arith.constant dense<0.000000e+00> : vector<12x64xf32>
    %174 = tpu.matmul %171, %23, %cst_143 {dimension_numbers = #tpu.dot_dimension_numbers<[1], [0], [0], [1], [0, 0, 1, 1], [], []>} : vector<12x32xf32>, vector<32x64xf32>, vector<12x64xf32> -> vector<12x64xf32>
    %175 = arith.addf %173, %174 : vector<12x64xf32>
    %cst_144 = arith.constant dense<0.000000e+00> : vector<12x64xf32>
    %176 = tpu.matmul %170, %25, %cst_144 {dimension_numbers = #tpu.dot_dimension_numbers<[1], [0], [0], [1], [0, 0, 1, 1], [], []>} : vector<12x32xf32>, vector<32x64xf32>, vector<12x64xf32> -> vector<12x64xf32>
    %177 = arith.addf %175, %176 : vector<12x64xf32>
    %cst_145 = arith.constant dense<0.000000e+00> : vector<12x64xf32>
    %178 = tpu.matmul %172, %27, %cst_145 {dimension_numbers = #tpu.dot_dimension_numbers<[1], [0], [0], [1], [0, 0, 1, 1], [], []>} : vector<12x32xf32>, vector<32x64xf32>, vector<12x64xf32> -> vector<12x64xf32>
    %179 = arith.addf %177, %178 : vector<12x64xf32>
    %180 = vector.broadcast %30 : vector<1x64xf32> to vector<12x64xf32>
    %181 = arith.addf %179, %180 : vector<12x64xf32>
    %cst_146 = arith.constant 0.000000e+00 : f32
    %182 = vector.broadcast %cst_146 : f32 to vector<12x64xf32>
    %183 = arith.maximumf %181, %182 : vector<12x64xf32>
    %cst_147 = arith.constant dense<0.000000e+00> : vector<4x64xf32>
    %184 = tpu.matmul %3, %183, %cst_147 {dimension_numbers = #tpu.dot_dimension_numbers<[1], [0], [0], [1], [0, 0, 1, 1], [], []>} : vector<4x12xf32>, vector<12x64xf32>, vector<4x64xf32> -> vector<4x64xf32>
    %c0_148 = arith.constant 0 : index
    %c0_149 = arith.constant 0 : index
    %185 = vector.load %arg12[%c0_148, %c0_149] : memref<64x128xf32, #tpu.memory_space<vmem>>, vector<64x128xf32>
    %cst_150 = arith.constant dense<0.000000e+00> : vector<4x128xf32>
    %186 = tpu.matmul %184, %185, %cst_150 {dimension_numbers = #tpu.dot_dimension_numbers<[1], [0], [0], [1], [0, 0, 1, 1], [], []>} : vector<4x64xf32>, vector<64x128xf32>, vector<4x128xf32> -> vector<4x128xf32>
    %c0_151 = arith.constant 0 : index
    %c0_152 = arith.constant 0 : index
    %187 = vector.load %arg13[%c0_151, %c0_152] : memref<1x128xf32, #tpu.memory_space<vmem>>, vector<1x128xf32>
    %188 = vector.broadcast %187 : vector<1x128xf32> to vector<4x128xf32>
    %189 = arith.addf %186, %188 : vector<4x128xf32>
    %190 = math.tanh %189 : vector<4x128xf32>
    %c0_153 = arith.constant 0 : index
    %c0_154 = arith.constant 0 : index
    %191 = vector.load %arg14[%c0_153, %c0_154] : memref<128x4xf32, #tpu.memory_space<vmem>>, vector<128x4xf32>
    %cst_155 = arith.constant dense<0.000000e+00> : vector<4x4xf32>
    %192 = tpu.matmul %190, %191, %cst_155 {dimension_numbers = #tpu.dot_dimension_numbers<[1], [0], [0], [1], [0, 0, 1, 1], [], []>} : vector<4x128xf32>, vector<128x4xf32>, vector<4x4xf32> -> vector<4x4xf32>
    %c0_156 = arith.constant 0 : index
    %c0_157 = arith.constant 0 : index
    %193 = vector.load %arg15[%c0_156, %c0_157] : memref<1x4xf32, #tpu.memory_space<vmem>>, vector<1x4xf32>
    %194 = vector.broadcast %193 : vector<1x4xf32> to vector<4x4xf32>
    %195 = arith.addf %192, %194 : vector<4x4xf32>
    %196 = vector.extract_strided_slice %195 {offsets = [0, 0], sizes = [4, 3], strides = [1, 1]} : vector<4x4xf32> to vector<4x3xf32>
    %cst_158 = arith.constant dense<0xFF800000> : vector<4xf32>
    %197 = vector.multi_reduction <maximumf>, %196, %cst_158 [1] : vector<4x3xf32> to vector<4xf32>
    %198 = vector.shape_cast %197 : vector<4xf32> to vector<4x1xf32>
    %199 = vector.broadcast %198 : vector<4x1xf32> to vector<4x3xf32>
    %200 = arith.subf %196, %199 : vector<4x3xf32>
    %201 = math.exp %200 : vector<4x3xf32>
    %cst_159 = arith.constant dense<0.000000e+00> : vector<4xf32>
    %202 = vector.multi_reduction <add>, %201, %cst_159 [1] : vector<4x3xf32> to vector<4xf32>
    %203 = vector.shape_cast %202 : vector<4xf32> to vector<4x1xf32>
    %204 = math.log %203 : vector<4x1xf32>
    %205 = arith.addf %198, %204 : vector<4x1xf32>
    %206 = vector.broadcast %205 : vector<4x1xf32> to vector<4x3xf32>
    %207 = arith.subf %196, %206 : vector<4x3xf32>
    %c0_160 = arith.constant 0 : index
    %c0_161 = arith.constant 0 : index
    %208 = vector.load %arg16[%c0_160, %c0_161] : memref<4x4xf32, #tpu.memory_space<vmem>>, vector<4x3xf32>
    tpu.vector_store %arg16[%c0_160, %c0_161], %207 {strides = array<i32>} : memref<4x4xf32, #tpu.memory_space<vmem>>, vector<4x3xf32>,
    %209 = vector.extract_strided_slice %195 {offsets = [0, 3], sizes = [4, 1], strides = [1, 1]} : vector<4x4xf32> to vector<4x1xf32>
    %c0_162 = arith.constant 0 : index
    %c3_163 = arith.constant 3 : index
    %210 = vector.load %arg16[%c0_162, %c3_163] : memref<4x4xf32, #tpu.memory_space<vmem>>, vector<4x1xf32>
    tpu.vector_store %arg16[%c0_162, %c3_163], %209 {strides = array<i32>} : memref<4x4xf32, #tpu.memory_space<vmem>>, vector<4x1xf32>,
    return
  }
  func.func @transform_0(%arg0: i32) -> (i32, i32, i32) {
    %c0_i32 = arith.constant 0 : i32
    %c0_i32_0 = arith.constant 0 : i32
    %c0_i32_1 = arith.constant 0 : i32
    %c0_i32_2 = arith.constant 0 : i32
    return %c0_i32, %c0_i32_0, %c0_i32_1 : i32, i32, i32
  }
  func.func @transform_1(%arg0: i32) -> (i32, i32) {
    %c0_i32 = arith.constant 0 : i32
    %c0_i32_0 = arith.constant 0 : i32
    %c0_i32_1 = arith.constant 0 : i32
    return %c0_i32, %c0_i32_0 : i32, i32
  }
  func.func @transform_2(%arg0: i32) -> (i32, i32) {
    %c0_i32 = arith.constant 0 : i32
    %c0_i32_0 = arith.constant 0 : i32
    %c0_i32_1 = arith.constant 0 : i32
    return %c0_i32, %c0_i32_0 : i32, i32
  }
  func.func @transform_3(%arg0: i32) -> (i32, i32) {
    %c0_i32 = arith.constant 0 : i32
    %c0_i32_0 = arith.constant 0 : i32
    %c0_i32_1 = arith.constant 0 : i32
    return %c0_i32, %c0_i32_0 : i32, i32
  }
  func.func @transform_4(%arg0: i32) -> (i32, i32) {
    %c0_i32 = arith.constant 0 : i32
    %c0_i32_0 = arith.constant 0 : i32
    %c0_i32_1 = arith.constant 0 : i32
    return %c0_i32, %c0_i32_0 : i32, i32
  }
  func.func @transform_5(%arg0: i32) -> (i32, i32, i32) {
    %c0_i32 = arith.constant 0 : i32
    %c0_i32_0 = arith.constant 0 : i32
    %c0_i32_1 = arith.constant 0 : i32
    %c0_i32_2 = arith.constant 0 : i32
    return %c0_i32, %c0_i32_0, %c0_i32_1 : i32, i32, i32
  }
  func.func @transform_6(%arg0: i32) -> (i32, i32) {
    %c0_i32 = arith.constant 0 : i32
    %c0_i32_0 = arith.constant 0 : i32
    %c0_i32_1 = arith.constant 0 : i32
    return %c0_i32, %c0_i32_0 : i32, i32
  }
  func.func @transform_7(%arg0: i32) -> (i32, i32, i32) {
    %c0_i32 = arith.constant 0 : i32
    %c0_i32_0 = arith.constant 0 : i32
    %c0_i32_1 = arith.constant 0 : i32
    %c0_i32_2 = arith.constant 0 : i32
    return %c0_i32, %c0_i32_0, %c0_i32_1 : i32, i32, i32
  }
  func.func @transform_8(%arg0: i32) -> (i32, i32) {
    %c0_i32 = arith.constant 0 : i32
    %c0_i32_0 = arith.constant 0 : i32
    %c0_i32_1 = arith.constant 0 : i32
    return %c0_i32, %c0_i32_0 : i32, i32
  }
  func.func @transform_9(%arg0: i32) -> (i32, i32, i32) {
    %c0_i32 = arith.constant 0 : i32
    %c0_i32_0 = arith.constant 0 : i32
    %c0_i32_1 = arith.constant 0 : i32
    %c0_i32_2 = arith.constant 0 : i32
    return %c0_i32, %c0_i32_0, %c0_i32_1 : i32, i32, i32
  }
  func.func @transform_10(%arg0: i32) -> (i32, i32) {
    %c0_i32 = arith.constant 0 : i32
    %c0_i32_0 = arith.constant 0 : i32
    %c0_i32_1 = arith.constant 0 : i32
    return %c0_i32, %c0_i32_0 : i32, i32
  }
  func.func @transform_11(%arg0: i32) -> (i32, i32) {
    %c0_i32 = arith.constant 0 : i32
    %c0_i32_0 = arith.constant 0 : i32
    %c0_i32_1 = arith.constant 0 : i32
    return %c0_i32, %c0_i32_0 : i32, i32
  }
  func.func @transform_12(%arg0: i32) -> (i32, i32) {
    %c0_i32 = arith.constant 0 : i32
    %c0_i32_0 = arith.constant 0 : i32
    %c0_i32_1 = arith.constant 0 : i32
    return %c0_i32, %c0_i32_0 : i32, i32
  }
  func.func @transform_13(%arg0: i32) -> (i32, i32) {
    %c0_i32 = arith.constant 0 : i32
    %c0_i32_0 = arith.constant 0 : i32
    %c0_i32_1 = arith.constant 0 : i32
    return %c0_i32, %c0_i32_0 : i32, i32
  }
  func.func @transform_14(%arg0: i32) -> (i32, i32) {
    %c0_i32 = arith.constant 0 : i32
    %c0_i32_0 = arith.constant 0 : i32
    %c0_i32_1 = arith.constant 0 : i32
    return %c0_i32, %c0_i32_0 : i32, i32
  }
  func.func @transform_15(%arg0: i32) -> (i32, i32) {
    %c0_i32 = arith.constant 0 : i32
    %c0_i32_0 = arith.constant 0 : i32
    %c0_i32_1 = arith.constant 0 : i32
    return %c0_i32, %c0_i32_0 : i32, i32
  }
}

</mosaic_0001>

<llo_original>
// kernel: ac_forward.1
$region0: #{ac_forward.1}
  #allocation0 [shape = 'u32[]', space=smem, size = 0x4, offset = 0x4, fixed_abs, tag = 'smem constant byte address 0x4 - core index']
  #allocation1 [shape = 'u32[72,128]{1,0:T(1,128)}', space=vmem, size = 0x9000, scoped, tag = 'internal scratch']
  %s0 = inlined_call_operand.vmem [shape: f32[8,32,3], index: 0, kind: input, shape index: {}]
  %s1 = inlined_call_operand.vmem [shape: f32[32,32], index: 1, kind: input, shape index: {}]
  %s2 = inlined_call_operand.vmem [shape: f32[12,32], index: 2, kind: input, shape index: {}]
  %s3 = inlined_call_operand.vmem [shape: f32[12,12], index: 3, kind: input, shape index: {}]
  %s4 = inlined_call_operand.vmem [shape: f32[4,12], index: 4, kind: input, shape index: {}]
  %s5 = inlined_call_operand.vmem [shape: f32[4,3,16], index: 5, kind: input, shape index: {}]
  %s6 = inlined_call_operand.vmem [shape: f32[1,16], index: 6, kind: input, shape index: {}]
  %s7 = inlined_call_operand.vmem [shape: f32[4,16,32], index: 7, kind: input, shape index: {}]
  %s8 = inlined_call_operand.vmem [shape: f32[1,32], index: 8, kind: input, shape index: {}]
  %s9 = inlined_call_operand.vmem [shape: f32[4,32,64], index: 9, kind: input, shape index: {}]
  %s10 = inlined_call_operand.vmem [shape: f32[1,64], index: 10, kind: input, shape index: {}]
  %s11 = inlined_call_operand.vmem [shape: f32[64,128], index: 11, kind: input, shape index: {}]
  %s12 = inlined_call_operand.vmem [shape: f32[1,128], index: 12, kind: input, shape index: {}]
  %s13 = inlined_call_operand.vmem [shape: f32[128,4], index: 13, kind: input, shape index: {}]
  %s14 = inlined_call_operand.vmem [shape: f32[1,4], index: 14, kind: input, shape index: {}]
  %s15 = inlined_call_operand.vmem [shape: f32[4,4], index: 15, kind: output, shape index: {}]
  %s16 = sld [smem:[#allocation0]]
  $region70: #{ac_forward.1} parent=0
    _
  %s18 = ssub.s32 1, %s16
  %s19 = scalar_select 0, %s18, %s16
  // Predicated region
  $region2: #{ac_forward.1} parent=0 // pred_check
    _
  $region3: #{ac_forward.1} parent=0 // pred_check_branch
    %21 = sbr.rel (0) target = $region5
  $region4: #{ac_forward.1} parent=0 // pred_region
    _
  $region5: #{ac_forward.1} parent=0 // pred_fallthru
    _
  // Predicated region
  $region6: #{ac_forward.1} parent=0 // pred_check
    _
  $region7: #{ac_forward.1} parent=0 // pred_check_branch
    %23 = sbr.rel (0) target = $region9
  $region8: #{ac_forward.1} parent=0 // pred_region
    _
  $region9: #{ac_forward.1} parent=0 // pred_fallthru
    _
  // Predicated region
  $region10: #{ac_forward.1} parent=0 // pred_check
    _
  $region11: #{ac_forward.1} parent=0 // pred_check_branch
    %25 = sbr.rel (0) target = $region13
  $region12: #{ac_forward.1} parent=0 // pred_region
    _
  $region13: #{ac_forward.1} parent=0 // pred_fallthru
    _
  // Predicated region
  $region14: #{ac_forward.1} parent=0 // pred_check
    _
  $region15: #{ac_forward.1} parent=0 // pred_check_branch
    %27 = sbr.rel (0) target = $region17
  $region16: #{ac_forward.1} parent=0 // pred_region
    _
  $region17: #{ac_forward.1} parent=0 // pred_fallthru
    _
  // Predicated region
  $region18: #{ac_forward.1} parent=0 // pred_check
    _
  $region19: #{ac_forward.1} parent=0 // pred_check_branch
    %29 = sbr.rel (0) target = $region21
  $region20: #{ac_forward.1} parent=0 // pred_region
    _
  $region21: #{ac_forward.1} parent=0 // pred_fallthru
    _
  // Predicated region
  $region22: #{ac_forward.1} parent=0 // pred_check
    _
  $region23: #{ac_forward.1} parent=0 // pred_check_branch
    %31 = sbr.rel (0) target = $region25
  $region24: #{ac_forward.1} parent=0 // pred_region
    _
  $region25: #{ac_forward.1} parent=0 // pred_fallthru
    _
  // Predicated region
  $region26: #{ac_forward.1} parent=0 // pred_check
    _
  $region27: #{ac_forward.1} parent=0 // pred_check_branch
    %33 = sbr.rel (0) target = $region29
  $region28: #{ac_forward.1} parent=0 // pred_region
    _
  $region29: #{ac_forward.1} parent=0 // pred_fallthru
    _
  // Predicated region
  $region30: #{ac_forward.1} parent=0 // pred_check
    _
  $region31: #{ac_forward.1} parent=0 // pred_check_branch
    %35 = sbr.rel (0) target = $region33
  $region32: #{ac_forward.1} parent=0 // pred_region
    _
  $region33: #{ac_forward.1} parent=0 // pred_fallthru
    _
  // Predicated region
  $region34: #{ac_forward.1} parent=0 // pred_check
    _
  $region35: #{ac_forward.1} parent=0 // pred_check_branch
    %37 = sbr.rel (0) target = $region37
  $region36: #{ac_forward.1} parent=0 // pred_region
    _
  $region37: #{ac_forward.1} parent=0 // pred_fallthru
    _
  // Predicated region
  $region38: #{ac_forward.1} parent=0 // pred_check
    _
  $region39: #{ac_forward.1} parent=0 // pred_check_branch
    %39 = sbr.rel (0) target = $region41
  $region40: #{ac_forward.1} parent=0 // pred_region
    _
  $region41: #{ac_forward.1} parent=0 // pred_fallthru
    _
  // Predicated region
  $region42: #{ac_forward.1} parent=0 // pred_check
    _
  $region43: #{ac_forward.1} parent=0 // pred_check_branch
    %41 = sbr.rel (0) target = $region45
  $region44: #{ac_forward.1} parent=0 // pred_region
    _
  $region45: #{ac_forward.1} parent=0 // pred_fallthru
    _
  // Predicated region
  $region46: #{ac_forward.1} parent=0 // pred_check
    _
  $region47: #{ac_forward.1} parent=0 // pred_check_branch
    %43 = sbr.rel (0) target = $region49
  $region48: #{ac_forward.1} parent=0 // pred_region
    _
  $region49: #{ac_forward.1} parent=0 // pred_fallthru
    _
  // Predicated region
  $region50: #{ac_forward.1} parent=0 // pred_check
    _
  $region51: #{ac_forward.1} parent=0 // pred_check_branch
    %45 = sbr.rel (0) target = $region53
  $region52: #{ac_forward.1} parent=0 // pred_region
    _
  $region53: #{ac_forward.1} parent=0 // pred_fallthru
    _
  // Predicated region
  $region54: #{ac_forward.1} parent=0 // pred_check
    _
  $region55: #{ac_forward.1} parent=0 // pred_check_branch
    %47 = sbr.rel (0) target = $region57
  $region56: #{ac_forward.1} parent=0 // pred_region
    _
  $region57: #{ac_forward.1} parent=0 // pred_fallthru
    _
  // Predicated region
  $region58: #{ac_forward.1} parent=0 // pred_check
    _
  $region59: #{ac_forward.1} parent=0 // pred_check_branch
    %49 = sbr.rel (0) target = $region61
  $region60: #{ac_forward.1} parent=0 // pred_region
    _
  $region61: #{ac_forward.1} parent=0 // pred_fallthru
    _
  %v50 = vld [vmem:[%s1] sm:$0xff]
  %v51 = vld [vmem:[%s1 + $0x8] sm:$0xff]
  %v52 = vld [vmem:[%s1 + $0x10] sm:$0xff]
  %v53 = vld [vmem:[%s1 + $0x18] sm:$0xff]
  %v54 = vld [vmem:[%s2] sm:$0xff]
  %v55 = vld [vmem:[%s2 + $0x8] sm:$0xf]
  %v56 = vld [vmem:[%s3] sm:$0xff]
  %v57 = vld [vmem:[%s3 + $0x8] sm:$0xf]
  %v58 = vld [vmem:[%s4] sm:$0xf]
  %v59 = vld [vmem:[%s5] sm:$0x7]
  %s60 = scalar_lea.vmem %s5, 4
  %v61 = vld [vmem:[%s60] sm:$0x7]
  %s62 = scalar_lea.vmem %s5, 8
  %v63 = vld [vmem:[%s62] sm:$0x7]
  %s64 = scalar_lea.vmem %s5, 12
  %v65 = vld [vmem:[%s64] sm:$0x7]
  %v66 = vld [vmem:[%s7] sm:$0xff]
  %v67 = vld [vmem:[%s7 + $0x8] sm:$0xff]
  %s68 = scalar_lea.vmem %s7, 16
  %v69 = vld [vmem:[%s68] sm:$0xff]
  %v70 = vld [vmem:[%s68 + $0x8] sm:$0xff]
  %s71 = scalar_lea.vmem %s7, 32
  %v72 = vld [vmem:[%s71] sm:$0xff]
  %v73 = vld [vmem:[%s71 + $0x8] sm:$0xff]
  %s74 = scalar_lea.vmem %s7, 48
  %v75 = vld [vmem:[%s74] sm:$0xff]
  %v76 = vld [vmem:[%s74 + $0x8] sm:$0xff]
  %v77 = vld [vmem:[%s9] sm:$0xff]
  %v78 = vld [vmem:[%s9 + $0x8] sm:$0xff]
  %v79 = vld [vmem:[%s9 + $0x10] sm:$0xff]
  %v80 = vld [vmem:[%s9 + $0x18] sm:$0xff]
  %s81 = scalar_lea.vmem %s9, 32
  %v82 = vld [vmem:[%s81] sm:$0xff]
  %v83 = vld [vmem:[%s81 + $0x8] sm:$0xff]
  %v84 = vld [vmem:[%s81 + $0x10] sm:$0xff]
  %v85 = vld [vmem:[%s81 + $0x18] sm:$0xff]
  %s86 = scalar_lea.vmem %s9, 64
  %v87 = vld [vmem:[%s86] sm:$0xff]
  %v88 = vld [vmem:[%s86 + $0x8] sm:$0xff]
  %v89 = vld [vmem:[%s86 + $0x10] sm:$0xff]
  %v90 = vld [vmem:[%s86 + $0x18] sm:$0xff]
  %s91 = scalar_lea.vmem %s9, 96
  %v92 = vld [vmem:[%s91] sm:$0xff]
  %v93 = vld [vmem:[%s91 + $0x8] sm:$0xff]
  %v94 = vld [vmem:[%s91 + $0x10] sm:$0xff]
  %v95 = vld [vmem:[%s91 + $0x18] sm:$0xff]
  %v96 = vld [vmem:[%s6] sm:$0x1]
  %v97 = vld [vmem:[%s8] sm:$0x1]
  %v98 = vld [vmem:[%s10] sm:$0x1]
  %v99 = vld [vmem:[%s0] sm:$0xff]
  %v100 = vld [vmem:[%s0 + $0x8] sm:$0xff]
  %v101 = vld [vmem:[%s0 + $0x10] sm:$0xff]
  %v102 = vld [vmem:[%s0 + $0x18] sm:$0xff]
  %s103 = scalar_lea.vmem %s0, 32
  %v104 = vld [vmem:[%s103] sm:$0xff]
  %v105 = vld [vmem:[%s103 + $0x8] sm:$0xff]
  %v106 = vld [vmem:[%s103 + $0x10] sm:$0xff]
  %v107 = vld [vmem:[%s103 + $0x18] sm:$0xff]
  %vm108 = vcmask 261120
  %v110 = vsel %vm108, %v50, 0
  %v113 = vsel %vm108, %v51, 0
  %v116 = vsel %vm108, %v52, 0
  %v119 = vsel %vm108, %v53, 0
  %121 = vmatpush.msra.mxu0 0.0
  %122 = vmatpush.msra.mxu0 0.0
  %123 = vmatpush.msra.mxu0 0.0
  %124 = vmatpush.msra.mxu0 0.0
  %125 = vmatpush.msra.mxu0 0.0
  %126 = vmatpush.msra.mxu0 0.0
  %127 = vmatpush.msra.mxu0 0.0
  %128 = vmatpush.msra.mxu0 0.0
  %129 = vmatpush.msra.mxu0 0.0
  %130 = vmatpush.msra.mxu0 0.0
  %131 = vmatpush.msra.mxu0 0.0
  %132 = vmatpush.msra.mxu0 0.0
  %133 = vmatpush.msra.mxu0 %v102
  %134 = vmatpush.msra.mxu0 %v101
  %135 = vmatpush.msra.mxu0 %v100
  %136 = vmatpush.msra.mxu0 %v99
  %137 = vmatmul.f32.gmra.mxu0 %v110
  %v138 = vpop.f32.mrf.mxu0
  %v139 = vadd.f32 0.0, %v138
  %140 = vmatmul.f32.gmra.mxu0 %v113
  %v141 = vpop.f32.mrf.mxu0
  %v142 = vadd.f32 0.0, %v141
  %143 = vmatmul.f32.gmra.mxu0 %v116
  %v144 = vpop.f32.mrf.mxu0
  %v145 = vadd.f32 0.0, %v144
  %146 = vmatmul.f32.gmra.mxu0 %v119
  %v147 = vpop.f32.mrf.mxu0
  %v148 = vadd.f32 0.0, %v147
  %149 = vdwg.mxu0
  %150 = vmatpush.msra.mxu0 0.0
  %151 = vmatpush.msra.mxu0 0.0
  %152 = vmatpush.msra.mxu0 0.0
  %153 = vmatpush.msra.mxu0 0.0
  %154 = vmatpush.msra.mxu0 0.0
  %155 = vmatpush.msra.mxu0 0.0
  %156 = vmatpush.msra.mxu0 0.0
  %157 = vmatpush.msra.mxu0 0.0
  %158 = vmatpush.msra.mxu0 0.0
  %159 = vmatpush.msra.mxu0 0.0
  %160 = vmatpush.msra.mxu0 0.0
  %161 = vmatpush.msra.mxu0 0.0
  %162 = vmatpush.msra.mxu0 %v107
  %163 = vmatpush.msra.mxu0 %v106
  %164 = vmatpush.msra.mxu0 %v105
  %165 = vmatpush.msra.mxu0 %v104
  %166 = vmatmul.f32.gmra.mxu0 %v110
  %v167 = vpop.f32.mrf.mxu0
  %v168 = vadd.f32 0.0, %v167
  %169 = vmatmul.f32.gmra.mxu0 %v113
  %v170 = vpop.f32.mrf.mxu0
  %v171 = vadd.f32 0.0, %v170
  %172 = vmatmul.f32.gmra.mxu0 %v116
  %v173 = vpop.f32.mrf.mxu0
  %v174 = vadd.f32 0.0, %v173
  %175 = vmatmul.f32.gmra.mxu0 %v119
  %v176 = vpop.f32.mrf.mxu0
  %v177 = vadd.f32 0.0, %v176
  %178 = vdwg.mxu0
  %vm179 = vcmask 23552
  %v181 = vsel %vm179, %v139, 0
  %v184 = vsel %vm179, %v142, 0
  %v187 = vsel %vm179, %v145, 0
  %v190 = vsel %vm179, %v148, 0
  %vm192 = vcmask 1042432
  %v194 = vsel %vm192, %v61, 0
  %196 = vmatpush.msra.mxu0 0.0
  %197 = vmatpush.msra.mxu0 0.0
  %198 = vmatpush.msra.mxu0 0.0
  %199 = vmatpush.msra.mxu0 0.0
  %200 = vmatpush.msra.mxu0 0.0
  %201 = vmatpush.msra.mxu0 0.0
  %202 = vmatpush.msra.mxu0 0.0
  %203 = vmatpush.msra.mxu0 0.0
  %204 = vmatpush.msra.mxu0 0.0
  %205 = vmatpush.msra.mxu0 0.0
  %206 = vmatpush.msra.mxu0 0.0
  %207 = vmatpush.msra.mxu0 0.0
  %208 = vmatpush.msra.mxu0 0.0
  %209 = vmatpush.msra.mxu0 0.0
  %210 = vmatpush.msra.mxu0 0.0
  %211 = vmatpush.msra.mxu0 %v194
  %212 = vmatmul.f32.gmra.mxu0 %v181
  %v213 = vpop.f32.mrf.mxu0
  %v214 = vadd.f32 0.0, %v213
  %215 = vmatmul.f32.gmra.mxu0 %v184
  %v216 = vpop.f32.mrf.mxu0
  %v217 = vadd.f32 0.0, %v216
  %218 = vmatmul.f32.gmra.mxu0 %v187
  %v219 = vpop.f32.mrf.mxu0
  %v220 = vadd.f32 0.0, %v219
  %221 = vmatmul.f32.gmra.mxu0 %v190
  %v222 = vpop.f32.mrf.mxu0
  %v223 = vadd.f32 0.0, %v222
  %224 = vdwg.mxu0
  %v226 = vsel %vm179, %v99, 0
  %v229 = vsel %vm179, %v100, 0
  %v232 = vsel %vm179, %v101, 0
  %v235 = vsel %vm179, %v102, 0
  %v238 = vsel %vm192, %v59, 0
  %240 = vmatpush.msra.mxu0 0.0
  %241 = vmatpush.msra.mxu0 0.0
  %242 = vmatpush.msra.mxu0 0.0
  %243 = vmatpush.msra.mxu0 0.0
  %244 = vmatpush.msra.mxu0 0.0
  %245 = vmatpush.msra.mxu0 0.0
  %246 = vmatpush.msra.mxu0 0.0
  %247 = vmatpush.msra.mxu0 0.0
  %248 = vmatpush.msra.mxu0 0.0
  %249 = vmatpush.msra.mxu0 0.0
  %250 = vmatpush.msra.mxu0 0.0
  %251 = vmatpush.msra.mxu0 0.0
  %252 = vmatpush.msra.mxu0 0.0
  %253 = vmatpush.msra.mxu0 0.0
  %254 = vmatpush.msra.mxu0 0.0
  %255 = vmatpush.msra.mxu0 %v238
  %256 = vmatmul.f32.gmra.mxu0 %v226
  %v257 = vpop.f32.mrf.mxu0
  %v258 = vadd.f32 %v214, %v257
  %259 = vmatmul.f32.gmra.mxu0 %v229
  %v260 = vpop.f32.mrf.mxu0
  %v261 = vadd.f32 %v217, %v260
  %262 = vmatmul.f32.gmra.mxu0 %v232
  %v263 = vpop.f32.mrf.mxu0
  %v264 = vadd.f32 %v220, %v263
  %265 = vmatmul.f32.gmra.mxu0 %v235
  %v266 = vpop.f32.mrf.mxu0
  %v267 = vadd.f32 %v223, %v266
  %268 = vdwg.mxu0
  %v270 = vsel %vm179, %v104, 0
  %v273 = vsel %vm179, %v105, 0
  %v276 = vsel %vm179, %v106, 0
  %v279 = vsel %vm179, %v107, 0
  %v282 = vsel %vm192, %v63, 0
  %284 = vmatpush.msra.mxu0 0.0
  %285 = vmatpush.msra.mxu0 0.0
  %286 = vmatpush.msra.mxu0 0.0
  %287 = vmatpush.msra.mxu0 0.0
  %288 = vmatpush.msra.mxu0 0.0
  %289 = vmatpush.msra.mxu0 0.0
  %290 = vmatpush.msra.mxu0 0.0
  %291 = vmatpush.msra.mxu0 0.0
  %292 = vmatpush.msra.mxu0 0.0
  %293 = vmatpush.msra.mxu0 0.0
  %294 = vmatpush.msra.mxu0 0.0
  %295 = vmatpush.msra.mxu0 0.0
  %296 = vmatpush.msra.mxu0 0.0
  %297 = vmatpush.msra.mxu0 0.0
  %298 = vmatpush.msra.mxu0 0.0
  %299 = vmatpush.msra.mxu0 %v282
  %300 = vmatmul.f32.gmra.mxu0 %v270
  %v301 = vpop.f32.mrf.mxu0
  %v302 = vadd.f32 0.0, %v301
  %303 = vmatmul.f32.gmra.mxu0 %v273
  %v304 = vpop.f32.mrf.mxu0
  %v305 = vadd.f32 0.0, %v304
  %306 = vmatmul.f32.gmra.mxu0 %v276
  %v307 = vpop.f32.mrf.mxu0
  %v308 = vadd.f32 0.0, %v307
  %309 = vmatmul.f32.gmra.mxu0 %v279
  %v310 = vpop.f32.mrf.mxu0
  %v311 = vadd.f32 0.0, %v310
  %312 = vdwg.mxu0
  %v313 = vadd.f32 %v258, %v302
  %v314 = vadd.f32 %v261, %v305
  %v315 = vadd.f32 %v264, %v308
  %v316 = vadd.f32 %v267, %v311
  %v318 = vsel %vm179, %v168, 0
  %v321 = vsel %vm179, %v171, 0
  %v324 = vsel %vm179, %v174, 0
  %v327 = vsel %vm179, %v177, 0
  %v330 = vsel %vm192, %v65, 0
  %332 = vmatpush.msra.mxu0 0.0
  %333 = vmatpush.msra.mxu0 0.0
  %334 = vmatpush.msra.mxu0 0.0
  %335 = vmatpush.msra.mxu0 0.0
  %336 = vmatpush.msra.mxu0 0.0
  %337 = vmatpush.msra.mxu0 0.0
  %338 = vmatpush.msra.mxu0 0.0
  %339 = vmatpush.msra.mxu0 0.0
  %340 = vmatpush.msra.mxu0 0.0
  %341 = vmatpush.msra.mxu0 0.0
  %342 = vmatpush.msra.mxu0 0.0
  %343 = vmatpush.msra.mxu0 0.0
  %344 = vmatpush.msra.mxu0 0.0
  %345 = vmatpush.msra.mxu0 0.0
  %346 = vmatpush.msra.mxu0 0.0
  %347 = vmatpush.msra.mxu0 %v330
  %348 = vmatmul.f32.gmra.mxu0 %v318
  %v349 = vpop.f32.mrf.mxu0
  %v350 = vadd.f32 0.0, %v349
  %351 = vmatmul.f32.gmra.mxu0 %v321
  %v352 = vpop.f32.mrf.mxu0
  %v353 = vadd.f32 0.0, %v352
  %354 = vmatmul.f32.gmra.mxu0 %v324
  %v355 = vpop.f32.mrf.mxu0
  %v356 = vadd.f32 0.0, %v355
  %357 = vmatmul.f32.gmra.mxu0 %v327
  %v358 = vpop.f32.mrf.mxu0
  %v359 = vadd.f32 0.0, %v358
  %360 = vdwg.mxu0
  %v361 = vadd.f32 %v313, %v350
  %v362 = vadd.f32 %v314, %v353
  %v363 = vadd.f32 %v315, %v356
  %v364 = vadd.f32 %v316, %v359
  %v366 = vperm.slane %v96, 0
  %v368 = vadd.f32 %v361, %v366
  %v369 = vadd.f32 %v362, %v366
  %v370 = vadd.f32 %v363, %v366
  %v371 = vadd.f32 %v364, %v366
  %v372 = vmax.f32 %v368, 0.0
  %v373 = vmax.f32 %v369, 0.0
  %v374 = vmax.f32 %v370, 0.0
  %v375 = vmax.f32 %v371, 0.0
  %s376 = scalar_lea.vmem %s0, 64
  %v377 = vld [vmem:[%s376] sm:$0xff]
  %v378 = vld [vmem:[%s376 + $0x8] sm:$0xff]
  %v379 = vld [vmem:[%s376 + $0x10] sm:$0xff]
  %v380 = vld [vmem:[%s376 + $0x18] sm:$0xff]
  %381 = vmatpush.msra.mxu0 0.0
  %382 = vmatpush.msra.mxu0 0.0
  %383 = vmatpush.msra.mxu0 0.0
  %384 = vmatpush.msra.mxu0 0.0
  %385 = vmatpush.msra.mxu0 0.0
  %386 = vmatpush.msra.mxu0 0.0
  %387 = vmatpush.msra.mxu0 0.0
  %388 = vmatpush.msra.mxu0 0.0
  %389 = vmatpush.msra.mxu0 0.0
  %390 = vmatpush.msra.mxu0 0.0
  %391 = vmatpush.msra.mxu0 0.0
  %392 = vmatpush.msra.mxu0 0.0
  %393 = vmatpush.msra.mxu0 %v380
  %394 = vmatpush.msra.mxu0 %v379
  %395 = vmatpush.msra.mxu0 %v378
  %396 = vmatpush.msra.mxu0 %v377
  %397 = vmatmul.f32.gmra.mxu0 %v110
  %v398 = vpop.f32.mrf.mxu0
  %v399 = vadd.f32 0.0, %v398
  %400 = vmatmul.f32.gmra.mxu0 %v113
  %v401 = vpop.f32.mrf.mxu0
  %v402 = vadd.f32 0.0, %v401
  %403 = vmatmul.f32.gmra.mxu0 %v116
  %v404 = vpop.f32.mrf.mxu0
  %v405 = vadd.f32 0.0, %v404
  %406 = vmatmul.f32.gmra.mxu0 %v119
  %v407 = vpop.f32.mrf.mxu0
  %v408 = vadd.f32 0.0, %v407
  %409 = vdwg.mxu0
  %410 = vmatpush.msra.mxu0 0.0
  %411 = vmatpush.msra.mxu0 0.0
  %412 = vmatpush.msra.mxu0 0.0
  %413 = vmatpush.msra.mxu0 0.0
  %414 = vmatpush.msra.mxu0 0.0
  %415 = vmatpush.msra.mxu0 0.0
  %416 = vmatpush.msra.mxu0 0.0
  %417 = vmatpush.msra.mxu0 0.0
  %418 = vmatpush.msra.mxu0 0.0
  %419 = vmatpush.msra.mxu0 0.0
  %420 = vmatpush.msra.mxu0 0.0
  %421 = vmatpush.msra.mxu0 0.0
  %422 = vmatpush.msra.mxu0 0.0
  %423 = vmatpush.msra.mxu0 0.0
  %424 = vmatpush.msra.mxu0 0.0
  %425 = vmatpush.msra.mxu0 %v194
  %426 = vmatmul.f32.gmra.mxu0 %v318
  %v427 = vpop.f32.mrf.mxu0
  %v428 = vadd.f32 0.0, %v427
  %429 = vmatmul.f32.gmra.mxu0 %v321
  %v430 = vpop.f32.mrf.mxu0
  %v431 = vadd.f32 0.0, %v430
  %432 = vmatmul.f32.gmra.mxu0 %v324
  %v433 = vpop.f32.mrf.mxu0
  %v434 = vadd.f32 0.0, %v433
  %435 = vmatmul.f32.gmra.mxu0 %v327
  %v436 = vpop.f32.mrf.mxu0
  %v437 = vadd.f32 0.0, %v436
  %438 = vdwg.mxu0
  %439 = vmatpush.msra.mxu0 0.0
  %440 = vmatpush.msra.mxu0 0.0
  %441 = vmatpush.msra.mxu0 0.0
  %442 = vmatpush.msra.mxu0 0.0
  %443 = vmatpush.msra.mxu0 0.0
  %444 = vmatpush.msra.mxu0 0.0
  %445 = vmatpush.msra.mxu0 0.0
  %446 = vmatpush.msra.mxu0 0.0
  %447 = vmatpush.msra.mxu0 0.0
  %448 = vmatpush.msra.mxu0 0.0
  %449 = vmatpush.msra.mxu0 0.0
  %450 = vmatpush.msra.mxu0 0.0
  %451 = vmatpush.msra.mxu0 0.0
  %452 = vmatpush.msra.mxu0 0.0
  %453 = vmatpush.msra.mxu0 0.0
  %454 = vmatpush.msra.mxu0 %v238
  %455 = vmatmul.f32.gmra.mxu0 %v270
  %v456 = vpop.f32.mrf.mxu0
  %v457 = vadd.f32 %v428, %v456
  %458 = vmatmul.f32.gmra.mxu0 %v273
  %v459 = vpop.f32.mrf.mxu0
  %v460 = vadd.f32 %v431, %v459
  %461 = vmatmul.f32.gmra.mxu0 %v276
  %v462 = vpop.f32.mrf.mxu0
  %v463 = vadd.f32 %v434, %v462
  %464 = vmatmul.f32.gmra.mxu0 %v279
  %v465 = vpop.f32.mrf.mxu0
  %v466 = vadd.f32 %v437, %v465
  %467 = vdwg.mxu0
  %v469 = vsel %vm179, %v377, 0
  %v472 = vsel %vm179, %v378, 0
  %v475 = vsel %vm179, %v379, 0
  %v478 = vsel %vm179, %v380, 0
  %480 = vmatpush.msra.mxu0 0.0
  %481 = vmatpush.msra.mxu0 0.0
  %482 = vmatpush.msra.mxu0 0.0
  %483 = vmatpush.msra.mxu0 0.0
  %484 = vmatpush.msra.mxu0 0.0
  %485 = vmatpush.msra.mxu0 0.0
  %486 = vmatpush.msra.mxu0 0.0
  %487 = vmatpush.msra.mxu0 0.0
  %488 = vmatpush.msra.mxu0 0.0
  %489 = vmatpush.msra.mxu0 0.0
  %490 = vmatpush.msra.mxu0 0.0
  %491 = vmatpush.msra.mxu0 0.0
  %492 = vmatpush.msra.mxu0 0.0
  %493 = vmatpush.msra.mxu0 0.0
  %494 = vmatpush.msra.mxu0 0.0
  %495 = vmatpush.msra.mxu0 %v282
  %496 = vmatmul.f32.gmra.mxu0 %v469
  %v497 = vpop.f32.mrf.mxu0
  %v498 = vadd.f32 0.0, %v497
  %499 = vmatmul.f32.gmra.mxu0 %v472
  %v500 = vpop.f32.mrf.mxu0
  %v501 = vadd.f32 0.0, %v500
  %502 = vmatmul.f32.gmra.mxu0 %v475
  %v503 = vpop.f32.mrf.mxu0
  %v504 = vadd.f32 0.0, %v503
  %505 = vmatmul.f32.gmra.mxu0 %v478
  %v506 = vpop.f32.mrf.mxu0
  %v507 = vadd.f32 0.0, %v506
  %508 = vdwg.mxu0
  %v509 = vadd.f32 %v457, %v498
  %v510 = vadd.f32 %v460, %v501
  %v511 = vadd.f32 %v463, %v504
  %v512 = vadd.f32 %v466, %v507
  %v514 = vsel %vm179, %v399, 0
  %v517 = vsel %vm179, %v402, 0
  %v520 = vsel %vm179, %v405, 0
  %v523 = vsel %vm179, %v408, 0
  %525 = vmatpush.msra.mxu0 0.0
  %526 = vmatpush.msra.mxu0 0.0
  %527 = vmatpush.msra.mxu0 0.0
  %528 = vmatpush.msra.mxu0 0.0
  %529 = vmatpush.msra.mxu0 0.0
  %530 = vmatpush.msra.mxu0 0.0
  %531 = vmatpush.msra.mxu0 0.0
  %532 = vmatpush.msra.mxu0 0.0
  %533 = vmatpush.msra.mxu0 0.0
  %534 = vmatpush.msra.mxu0 0.0
  %535 = vmatpush.msra.mxu0 0.0
  %536 = vmatpush.msra.mxu0 0.0
  %537 = vmatpush.msra.mxu0 0.0
  %538 = vmatpush.msra.mxu0 0.0
  %539 = vmatpush.msra.mxu0 0.0
  %540 = vmatpush.msra.mxu0 %v330
  %541 = vmatmul.f32.gmra.mxu0 %v514
  %v542 = vpop.f32.mrf.mxu0
  %v543 = vadd.f32 0.0, %v542
  %544 = vmatmul.f32.gmra.mxu0 %v517
  %v545 = vpop.f32.mrf.mxu0
  %v546 = vadd.f32 0.0, %v545
  %547 = vmatmul.f32.gmra.mxu0 %v520
  %v548 = vpop.f32.mrf.mxu0
  %v549 = vadd.f32 0.0, %v548
  %550 = vmatmul.f32.gmra.mxu0 %v523
  %v551 = vpop.f32.mrf.mxu0
  %v552 = vadd.f32 0.0, %v551
  %553 = vdwg.mxu0
  %v554 = vadd.f32 %v509, %v543
  %v555 = vadd.f32 %v510, %v546
  %v556 = vadd.f32 %v511, %v549
  %v557 = vadd.f32 %v512, %v552
  %v558 = vadd.f32 %v554, %v366
  %v559 = vadd.f32 %v555, %v366
  %v560 = vadd.f32 %v556, %v366
  %v561 = vadd.f32 %v557, %v366
  %v562 = vmax.f32 %v558, 0.0
  %v563 = vmax.f32 %v559, 0.0
  %v564 = vmax.f32 %v560, 0.0
  %v565 = vmax.f32 %v561, 0.0
  %v566 = vmax.f32 %v372, %v562
  %v567 = vmax.f32 %v373, %v563
  %v568 = vmax.f32 %v374, %v564
  %v569 = vmax.f32 %v375, %v565
  %570 = vmatpush.msra.mxu0 0.0
  %571 = vmatpush.msra.mxu0 0.0
  %572 = vmatpush.msra.mxu0 0.0
  %573 = vmatpush.msra.mxu0 0.0
  %574 = vmatpush.msra.mxu0 0.0
  %575 = vmatpush.msra.mxu0 0.0
  %576 = vmatpush.msra.mxu0 0.0
  %577 = vmatpush.msra.mxu0 0.0
  %578 = vmatpush.msra.mxu0 0.0
  %579 = vmatpush.msra.mxu0 0.0
  %580 = vmatpush.msra.mxu0 0.0
  %581 = vmatpush.msra.mxu0 0.0
  %582 = vmatpush.msra.mxu0 %v569
  %583 = vmatpush.msra.mxu0 %v568
  %584 = vmatpush.msra.mxu0 %v567
  %585 = vmatpush.msra.mxu0 %v566
  %586 = vmatmul.f32.gmra.mxu0 %v110
  %v587 = vpop.f32.mrf.mxu0
  %v588 = vadd.f32 0.0, %v587
  %589 = vmatmul.f32.gmra.mxu0 %v113
  %v590 = vpop.f32.mrf.mxu0
  %v591 = vadd.f32 0.0, %v590
  %592 = vmatmul.f32.gmra.mxu0 %v116
  %v593 = vpop.f32.mrf.mxu0
  %v594 = vadd.f32 0.0, %v593
  %595 = vmatmul.f32.gmra.mxu0 %v119
  %v596 = vpop.f32.mrf.mxu0
  %v597 = vadd.f32 0.0, %v596
  %598 = vdwg.mxu0
  %v599 = vmax.f32 %v566, %v588
  %v600 = vmax.f32 %v567, %v591
  %v601 = vmax.f32 %v568, %v594
  %v602 = vmax.f32 %v569, %v597
  %v604 = vsel %vm108, %v54, 0
  %v607 = vsel %vm108, %v55, 0
  %609 = vmatpush.msra.mxu0 0.0
  %610 = vmatpush.msra.mxu0 0.0
  %611 = vmatpush.msra.mxu0 0.0
  %612 = vmatpush.msra.mxu0 0.0
  %613 = vmatpush.msra.mxu0 0.0
  %614 = vmatpush.msra.mxu0 0.0
  %615 = vmatpush.msra.mxu0 0.0
  %616 = vmatpush.msra.mxu0 0.0
  %617 = vmatpush.msra.mxu0 0.0
  %618 = vmatpush.msra.mxu0 0.0
  %619 = vmatpush.msra.mxu0 0.0
  %620 = vmatpush.msra.mxu0 0.0
  %621 = vmatpush.msra.mxu0 %v602
  %622 = vmatpush.msra.mxu0 %v601
  %623 = vmatpush.msra.mxu0 %v600
  %624 = vmatpush.msra.mxu0 %v599
  %625 = vmatmul.f32.gmra.mxu0 %v604
  %v626 = vpop.f32.mrf.mxu0
  %v627 = vadd.f32 0.0, %v626
  %628 = vmatmul.f32.gmra.mxu0 %v607
  %v629 = vpop.f32.mrf.mxu0
  %v630 = vadd.f32 0.0, %v629
  %631 = vdwg.mxu0
  %s632 = scalar_lea.vmem %s0, 96
  %v633 = vld [vmem:[%s632] sm:$0xff]
  %v634 = vld [vmem:[%s632 + $0x8] sm:$0xff]
  %v635 = vld [vmem:[%s632 + $0x10] sm:$0xff]
  %v636 = vld [vmem:[%s632 + $0x18] sm:$0xff]
  %637 = vmatpush.msra.mxu0 0.0
  %638 = vmatpush.msra.mxu0 0.0
  %639 = vmatpush.msra.mxu0 0.0
  %640 = vmatpush.msra.mxu0 0.0
  %641 = vmatpush.msra.mxu0 0.0
  %642 = vmatpush.msra.mxu0 0.0
  %643 = vmatpush.msra.mxu0 0.0
  %644 = vmatpush.msra.mxu0 0.0
  %645 = vmatpush.msra.mxu0 0.0
  %646 = vmatpush.msra.mxu0 0.0
  %647 = vmatpush.msra.mxu0 0.0
  %648 = vmatpush.msra.mxu0 0.0
  %649 = vmatpush.msra.mxu0 %v636
  %650 = vmatpush.msra.mxu0 %v635
  %651 = vmatpush.msra.mxu0 %v634
  %652 = vmatpush.msra.mxu0 %v633
  %653 = vmatmul.f32.gmra.mxu0 %v110
  %v654 = vpop.f32.mrf.mxu0
  %v655 = vadd.f32 0.0, %v654
  %656 = vmatmul.f32.gmra.mxu0 %v113
  %v657 = vpop.f32.mrf.mxu0
  %v658 = vadd.f32 0.0, %v657
  %659 = vmatmul.f32.gmra.mxu0 %v116
  %v660 = vpop.f32.mrf.mxu0
  %v661 = vadd.f32 0.0, %v660
  %662 = vmatmul.f32.gmra.mxu0 %v119
  %v663 = vpop.f32.mrf.mxu0
  %v664 = vadd.f32 0.0, %v663
  %665 = vdwg.mxu0
  %666 = vmatpush.msra.mxu0 0.0
  %667 = vmatpush.msra.mxu0 0.0
  %668 = vmatpush.msra.mxu0 0.0
  %669 = vmatpush.msra.mxu0 0.0
  %670 = vmatpush.msra.mxu0 0.0
  %671 = vmatpush.msra.mxu0 0.0
  %672 = vmatpush.msra.mxu0 0.0
  %673 = vmatpush.msra.mxu0 0.0
  %674 = vmatpush.msra.mxu0 0.0
  %675 = vmatpush.msra.mxu0 0.0
  %676 = vmatpush.msra.mxu0 0.0
  %677 = vmatpush.msra.mxu0 0.0
  %678 = vmatpush.msra.mxu0 0.0
  %679 = vmatpush.msra.mxu0 0.0
  %680 = vmatpush.msra.mxu0 0.0
  %681 = vmatpush.msra.mxu0 %v194
  %682 = vmatmul.f32.gmra.mxu0 %v514
  %v683 = vpop.f32.mrf.mxu0
  %v684 = vadd.f32 0.0, %v683
  %685 = vmatmul.f32.gmra.mxu0 %v517
  %v686 = vpop.f32.mrf.mxu0
  %v687 = vadd.f32 0.0, %v686
  %688 = vmatmul.f32.gmra.mxu0 %v520
  %v689 = vpop.f32.mrf.mxu0
  %v690 = vadd.f32 0.0, %v689
  %691 = vmatmul.f32.gmra.mxu0 %v523
  %v692 = vpop.f32.mrf.mxu0
  %v693 = vadd.f32 0.0, %v692
  %694 = vdwg.mxu0
  %695 = vmatpush.msra.mxu0 0.0
  %696 = vmatpush.msra.mxu0 0.0
  %697 = vmatpush.msra.mxu0 0.0
  %698 = vmatpush.msra.mxu0 0.0
  %699 = vmatpush.msra.mxu0 0.0
  %700 = vmatpush.msra.mxu0 0.0
  %701 = vmatpush.msra.mxu0 0.0
  %702 = vmatpush.msra.mxu0 0.0
  %703 = vmatpush.msra.mxu0 0.0
  %704 = vmatpush.msra.mxu0 0.0
  %705 = vmatpush.msra.mxu0 0.0
  %706 = vmatpush.msra.mxu0 0.0
  %707 = vmatpush.msra.mxu0 0.0
  %708 = vmatpush.msra.mxu0 0.0
  %709 = vmatpush.msra.mxu0 0.0
  %710 = vmatpush.msra.mxu0 %v238
  %711 = vmatmul.f32.gmra.mxu0 %v469
  %v712 = vpop.f32.mrf.mxu0
  %v713 = vadd.f32 %v684, %v712
  %714 = vmatmul.f32.gmra.mxu0 %v472
  %v715 = vpop.f32.mrf.mxu0
  %v716 = vadd.f32 %v687, %v715
  %717 = vmatmul.f32.gmra.mxu0 %v475
  %v718 = vpop.f32.mrf.mxu0
  %v719 = vadd.f32 %v690, %v718
  %720 = vmatmul.f32.gmra.mxu0 %v478
  %v721 = vpop.f32.mrf.mxu0
  %v722 = vadd.f32 %v693, %v721
  %723 = vdwg.mxu0
  %v725 = vsel %vm179, %v633, 0
  %v728 = vsel %vm179, %v634, 0
  %v731 = vsel %vm179, %v635, 0
  %v734 = vsel %vm179, %v636, 0
  %736 = vmatpush.msra.mxu0 0.0
  %737 = vmatpush.msra.mxu0 0.0
  %738 = vmatpush.msra.mxu0 0.0
  %739 = vmatpush.msra.mxu0 0.0
  %740 = vmatpush.msra.mxu0 0.0
  %741 = vmatpush.msra.mxu0 0.0
  %742 = vmatpush.msra.mxu0 0.0
  %743 = vmatpush.msra.mxu0 0.0
  %744 = vmatpush.msra.mxu0 0.0
  %745 = vmatpush.msra.mxu0 0.0
  %746 = vmatpush.msra.mxu0 0.0
  %747 = vmatpush.msra.mxu0 0.0
  %748 = vmatpush.msra.mxu0 0.0
  %749 = vmatpush.msra.mxu0 0.0
  %750 = vmatpush.msra.mxu0 0.0
  %751 = vmatpush.msra.mxu0 %v282
  %752 = vmatmul.f32.gmra.mxu0 %v725
  %v753 = vpop.f32.mrf.mxu0
  %v754 = vadd.f32 0.0, %v753
  %755 = vmatmul.f32.gmra.mxu0 %v728
  %v756 = vpop.f32.mrf.mxu0
  %v757 = vadd.f32 0.0, %v756
  %758 = vmatmul.f32.gmra.mxu0 %v731
  %v759 = vpop.f32.mrf.mxu0
  %v760 = vadd.f32 0.0, %v759
  %761 = vmatmul.f32.gmra.mxu0 %v734
  %v762 = vpop.f32.mrf.mxu0
  %v763 = vadd.f32 0.0, %v762
  %764 = vdwg.mxu0
  %v765 = vadd.f32 %v713, %v754
  %v766 = vadd.f32 %v716, %v757
  %v767 = vadd.f32 %v719, %v760
  %v768 = vadd.f32 %v722, %v763
  %v770 = vsel %vm179, %v655, 0
  %v773 = vsel %vm179, %v658, 0
  %v776 = vsel %vm179, %v661, 0
  %v779 = vsel %vm179, %v664, 0
  %781 = vmatpush.msra.mxu0 0.0
  %782 = vmatpush.msra.mxu0 0.0
  %783 = vmatpush.msra.mxu0 0.0
  %784 = vmatpush.msra.mxu0 0.0
  %785 = vmatpush.msra.mxu0 0.0
  %786 = vmatpush.msra.mxu0 0.0
  %787 = vmatpush.msra.mxu0 0.0
  %788 = vmatpush.msra.mxu0 0.0
  %789 = vmatpush.msra.mxu0 0.0
  %790 = vmatpush.msra.mxu0 0.0
  %791 = vmatpush.msra.mxu0 0.0
  %792 = vmatpush.msra.mxu0 0.0
  %793 = vmatpush.msra.mxu0 0.0
  %794 = vmatpush.msra.mxu0 0.0
  %795 = vmatpush.msra.mxu0 0.0
  %796 = vmatpush.msra.mxu0 %v330
  %797 = vmatmul.f32.gmra.mxu0 %v770
  %v798 = vpop.f32.mrf.mxu0
  %v799 = vadd.f32 0.0, %v798
  %800 = vmatmul.f32.gmra.mxu0 %v773
  %v801 = vpop.f32.mrf.mxu0
  %v802 = vadd.f32 0.0, %v801
  %803 = vmatmul.f32.gmra.mxu0 %v776
  %v804 = vpop.f32.mrf.mxu0
  %v805 = vadd.f32 0.0, %v804
  %806 = vmatmul.f32.gmra.mxu0 %v779
  %v807 = vpop.f32.mrf.mxu0
  %v808 = vadd.f32 0.0, %v807
  %809 = vdwg.mxu0
  %v810 = vadd.f32 %v765, %v799
  %v811 = vadd.f32 %v766, %v802
  %v812 = vadd.f32 %v767, %v805
  %v813 = vadd.f32 %v768, %v808
  %v814 = vadd.f32 %v810, %v366
  %v815 = vadd.f32 %v811, %v366
  %v816 = vadd.f32 %v812, %v366
  %v817 = vadd.f32 %v813, %v366
  %v818 = vmax.f32 %v814, 0.0
  %v819 = vmax.f32 %v815, 0.0
  %v820 = vmax.f32 %v816, 0.0
  %v821 = vmax.f32 %v817, 0.0
  %s822 = scalar_lea.vmem %s0, 128
  %v823 = vld [vmem:[%s822] sm:$0xff]
  %v824 = vld [vmem:[%s822 + $0x8] sm:$0xff]
  %v825 = vld [vmem:[%s822 + $0x10] sm:$0xff]
  %v826 = vld [vmem:[%s822 + $0x18] sm:$0xff]
  %827 = vmatpush.msra.mxu0 0.0
  %828 = vmatpush.msra.mxu0 0.0
  %829 = vmatpush.msra.mxu0 0.0
  %830 = vmatpush.msra.mxu0 0.0
  %831 = vmatpush.msra.mxu0 0.0
  %832 = vmatpush.msra.mxu0 0.0
  %833 = vmatpush.msra.mxu0 0.0
  %834 = vmatpush.msra.mxu0 0.0
  %835 = vmatpush.msra.mxu0 0.0
  %836 = vmatpush.msra.mxu0 0.0
  %837 = vmatpush.msra.mxu0 0.0
  %838 = vmatpush.msra.mxu0 0.0
  %839 = vmatpush.msra.mxu0 %v826
  %840 = vmatpush.msra.mxu0 %v825
  %841 = vmatpush.msra.mxu0 %v824
  %842 = vmatpush.msra.mxu0 %v823
  %843 = vmatmul.f32.gmra.mxu0 %v110
  %v844 = vpop.f32.mrf.mxu0
  %v845 = vadd.f32 0.0, %v844
  %846 = vmatmul.f32.gmra.mxu0 %v113
  %v847 = vpop.f32.mrf.mxu0
  %v848 = vadd.f32 0.0, %v847
  %849 = vmatmul.f32.gmra.mxu0 %v116
  %v850 = vpop.f32.mrf.mxu0
  %v851 = vadd.f32 0.0, %v850
  %852 = vmatmul.f32.gmra.mxu0 %v119
  %v853 = vpop.f32.mrf.mxu0
  %v854 = vadd.f32 0.0, %v853
  %855 = vdwg.mxu0
  %856 = vmatpush.msra.mxu0 0.0
  %857 = vmatpush.msra.mxu0 0.0
  %858 = vmatpush.msra.mxu0 0.0
  %859 = vmatpush.msra.mxu0 0.0
  %860 = vmatpush.msra.mxu0 0.0
  %861 = vmatpush.msra.mxu0 0.0
  %862 = vmatpush.msra.mxu0 0.0
  %863 = vmatpush.msra.mxu0 0.0
  %864 = vmatpush.msra.mxu0 0.0
  %865 = vmatpush.msra.mxu0 0.0
  %866 = vmatpush.msra.mxu0 0.0
  %867 = vmatpush.msra.mxu0 0.0
  %868 = vmatpush.msra.mxu0 0.0
  %869 = vmatpush.msra.mxu0 0.0
  %870 = vmatpush.msra.mxu0 0.0
  %871 = vmatpush.msra.mxu0 %v194
  %872 = vmatmul.f32.gmra.mxu0 %v770
  %v873 = vpop.f32.mrf.mxu0
  %v874 = vadd.f32 0.0, %v873
  %875 = vmatmul.f32.gmra.mxu0 %v773
  %v876 = vpop.f32.mrf.mxu0
  %v877 = vadd.f32 0.0, %v876
  %878 = vmatmul.f32.gmra.mxu0 %v776
  %v879 = vpop.f32.mrf.mxu0
  %v880 = vadd.f32 0.0, %v879
  %881 = vmatmul.f32.gmra.mxu0 %v779
  %v882 = vpop.f32.mrf.mxu0
  %v883 = vadd.f32 0.0, %v882
  %884 = vdwg.mxu0
  %885 = vmatpush.msra.mxu0 0.0
  %886 = vmatpush.msra.mxu0 0.0
  %887 = vmatpush.msra.mxu0 0.0
  %888 = vmatpush.msra.mxu0 0.0
  %889 = vmatpush.msra.mxu0 0.0
  %890 = vmatpush.msra.mxu0 0.0
  %891 = vmatpush.msra.mxu0 0.0
  %892 = vmatpush.msra.mxu0 0.0
  %893 = vmatpush.msra.mxu0 0.0
  %894 = vmatpush.msra.mxu0 0.0
  %895 = vmatpush.msra.mxu0 0.0
  %896 = vmatpush.msra.mxu0 0.0
  %897 = vmatpush.msra.mxu0 0.0
  %898 = vmatpush.msra.mxu0 0.0
  %899 = vmatpush.msra.mxu0 0.0
  %900 = vmatpush.msra.mxu0 %v238
  %901 = vmatmul.f32.gmra.mxu0 %v725
  %v902 = vpop.f32.mrf.mxu0
  %v903 = vadd.f32 %v874, %v902
  %904 = vmatmul.f32.gmra.mxu0 %v728
  %v905 = vpop.f32.mrf.mxu0
  %v906 = vadd.f32 %v877, %v905
  %907 = vmatmul.f32.gmra.mxu0 %v731
  %v908 = vpop.f32.mrf.mxu0
  %v909 = vadd.f32 %v880, %v908
  %910 = vmatmul.f32.gmra.mxu0 %v734
  %v911 = vpop.f32.mrf.mxu0
  %v912 = vadd.f32 %v883, %v911
  %913 = vdwg.mxu0
  %v915 = vsel %vm179, %v823, 0
  %v918 = vsel %vm179, %v824, 0
  %v921 = vsel %vm179, %v825, 0
  %v924 = vsel %vm179, %v826, 0
  %926 = vmatpush.msra.mxu0 0.0
  %927 = vmatpush.msra.mxu0 0.0
  %928 = vmatpush.msra.mxu0 0.0
  %929 = vmatpush.msra.mxu0 0.0
  %930 = vmatpush.msra.mxu0 0.0
  %931 = vmatpush.msra.mxu0 0.0
  %932 = vmatpush.msra.mxu0 0.0
  %933 = vmatpush.msra.mxu0 0.0
  %934 = vmatpush.msra.mxu0 0.0
  %935 = vmatpush.msra.mxu0 0.0
  %936 = vmatpush.msra.mxu0 0.0
  %937 = vmatpush.msra.mxu0 0.0
  %938 = vmatpush.msra.mxu0 0.0
  %939 = vmatpush.msra.mxu0 0.0
  %940 = vmatpush.msra.mxu0 0.0
  %941 = vmatpush.msra.mxu0 %v282
  %942 = vmatmul.f32.gmra.mxu0 %v915
  %v943 = vpop.f32.mrf.mxu0
  %v944 = vadd.f32 0.0, %v943
  %945 = vmatmul.f32.gmra.mxu0 %v918
  %v946 = vpop.f32.mrf.mxu0
  %v947 = vadd.f32 0.0, %v946
  %948 = vmatmul.f32.gmra.mxu0 %v921
  %v949 = vpop.f32.mrf.mxu0
  %v950 = vadd.f32 0.0, %v949
  %951 = vmatmul.f32.gmra.mxu0 %v924
  %v952 = vpop.f32.mrf.mxu0
  %v953 = vadd.f32 0.0, %v952
  %954 = vdwg.mxu0
  %v955 = vadd.f32 %v903, %v944
  %v956 = vadd.f32 %v906, %v947
  %v957 = vadd.f32 %v909, %v950
  %v958 = vadd.f32 %v912, %v953
  %v960 = vsel %vm179, %v845, 0
  %v963 = vsel %vm179, %v848, 0
  %v966 = vsel %vm179, %v851, 0
  %v969 = vsel %vm179, %v854, 0
  %971 = vmatpush.msra.mxu0 0.0
  %972 = vmatpush.msra.mxu0 0.0
  %973 = vmatpush.msra.mxu0 0.0
  %974 = vmatpush.msra.mxu0 0.0
  %975 = vmatpush.msra.mxu0 0.0
  %976 = vmatpush.msra.mxu0 0.0
  %977 = vmatpush.msra.mxu0 0.0
  %978 = vmatpush.msra.mxu0 0.0
  %979 = vmatpush.msra.mxu0 0.0
  %980 = vmatpush.msra.mxu0 0.0
  %981 = vmatpush.msra.mxu0 0.0
  %982 = vmatpush.msra.mxu0 0.0
  %983 = vmatpush.msra.mxu0 0.0
  %984 = vmatpush.msra.mxu0 0.0
  %985 = vmatpush.msra.mxu0 0.0
  %986 = vmatpush.msra.mxu0 %v330
  %987 = vmatmul.f32.gmra.mxu0 %v960
  %v988 = vpop.f32.mrf.mxu0
  %v989 = vadd.f32 0.0, %v988
  %990 = vmatmul.f32.gmra.mxu0 %v963
  %v991 = vpop.f32.mrf.mxu0
  %v992 = vadd.f32 0.0, %v991
  %993 = vmatmul.f32.gmra.mxu0 %v966
  %v994 = vpop.f32.mrf.mxu0
  %v995 = vadd.f32 0.0, %v994
  %996 = vmatmul.f32.gmra.mxu0 %v969
  %v997 = vpop.f32.mrf.mxu0
  %v998 = vadd.f32 0.0, %v997
  %999 = vdwg.mxu0
  %v1000 = vadd.f32 %v955, %v989
  %v1001 = vadd.f32 %v956, %v992
  %v1002 = vadd.f32 %v957, %v995
  %v1003 = vadd.f32 %v958, %v998
  %v1004 = vadd.f32 %v1000, %v366
  %v1005 = vadd.f32 %v1001, %v366
  %v1006 = vadd.f32 %v1002, %v366
  %v1007 = vadd.f32 %v1003, %v366
  %v1008 = vmax.f32 %v1004, 0.0
  %v1009 = vmax.f32 %v1005, 0.0
  %v1010 = vmax.f32 %v1006, 0.0
  %v1011 = vmax.f32 %v1007, 0.0
  %v1012 = vmax.f32 %v818, %v1008
  %v1013 = vmax.f32 %v819, %v1009
  %v1014 = vmax.f32 %v820, %v1010
  %v1015 = vmax.f32 %v821, %v1011
  %1016 = vmatpush.msra.mxu0 0.0
  %1017 = vmatpush.msra.mxu0 0.0
  %1018 = vmatpush.msra.mxu0 0.0
  %1019 = vmatpush.msra.mxu0 0.0
  %1020 = vmatpush.msra.mxu0 0.0
  %1021 = vmatpush.msra.mxu0 0.0
  %1022 = vmatpush.msra.mxu0 0.0
  %1023 = vmatpush.msra.mxu0 0.0
  %1024 = vmatpush.msra.mxu0 0.0
  %1025 = vmatpush.msra.mxu0 0.0
  %1026 = vmatpush.msra.mxu0 0.0
  %1027 = vmatpush.msra.mxu0 0.0
  %1028 = vmatpush.msra.mxu0 %v1015
  %1029 = vmatpush.msra.mxu0 %v1014
  %1030 = vmatpush.msra.mxu0 %v1013
  %1031 = vmatpush.msra.mxu0 %v1012
  %1032 = vmatmul.f32.gmra.mxu0 %v110
  %v1033 = vpop.f32.mrf.mxu0
  %v1034 = vadd.f32 0.0, %v1033
  %1035 = vmatmul.f32.gmra.mxu0 %v113
  %v1036 = vpop.f32.mrf.mxu0
  %v1037 = vadd.f32 0.0, %v1036
  %1038 = vmatmul.f32.gmra.mxu0 %v116
  %v1039 = vpop.f32.mrf.mxu0
  %v1040 = vadd.f32 0.0, %v1039
  %1041 = vmatmul.f32.gmra.mxu0 %v119
  %v1042 = vpop.f32.mrf.mxu0
  %v1043 = vadd.f32 0.0, %v1042
  %1044 = vdwg.mxu0
  %v1045 = vmax.f32 %v1012, %v1034
  %v1046 = vmax.f32 %v1013, %v1037
  %v1047 = vmax.f32 %v1014, %v1040
  %v1048 = vmax.f32 %v1015, %v1043
  %1049 = vmatpush.msra.mxu0 0.0
  %1050 = vmatpush.msra.mxu0 0.0
  %1051 = vmatpush.msra.mxu0 0.0
  %1052 = vmatpush.msra.mxu0 0.0
  %1053 = vmatpush.msra.mxu0 0.0
  %1054 = vmatpush.msra.mxu0 0.0
  %1055 = vmatpush.msra.mxu0 0.0
  %1056 = vmatpush.msra.mxu0 0.0
  %1057 = vmatpush.msra.mxu0 0.0
  %1058 = vmatpush.msra.mxu0 0.0
  %1059 = vmatpush.msra.mxu0 0.0
  %1060 = vmatpush.msra.mxu0 0.0
  %1061 = vmatpush.msra.mxu0 %v1048
  %1062 = vmatpush.msra.mxu0 %v1047
  %1063 = vmatpush.msra.mxu0 %v1046
  %1064 = vmatpush.msra.mxu0 %v1045
  %1065 = vmatmul.f32.gmra.mxu0 %v604
  %v1066 = vpop.f32.mrf.mxu0
  %v1067 = vadd.f32 0.0, %v1066
  %1068 = vmatmul.f32.gmra.mxu0 %v607
  %v1069 = vpop.f32.mrf.mxu0
  %v1070 = vadd.f32 0.0, %v1069
  %1071 = vdwg.mxu0
  %s1072 = scalar_lea.vmem %s0, 160
  %v1073 = vld [vmem:[%s1072] sm:$0xff]
  %v1074 = vld [vmem:[%s1072 + $0x8] sm:$0xff]
  %v1075 = vld [vmem:[%s1072 + $0x10] sm:$0xff]
  %v1076 = vld [vmem:[%s1072 + $0x18] sm:$0xff]
  %1077 = vmatpush.msra.mxu0 0.0
  %1078 = vmatpush.msra.mxu0 0.0
  %1079 = vmatpush.msra.mxu0 0.0
  %1080 = vmatpush.msra.mxu0 0.0
  %1081 = vmatpush.msra.mxu0 0.0
  %1082 = vmatpush.msra.mxu0 0.0
  %1083 = vmatpush.msra.mxu0 0.0
  %1084 = vmatpush.msra.mxu0 0.0
  %1085 = vmatpush.msra.mxu0 0.0
  %1086 = vmatpush.msra.mxu0 0.0
  %1087 = vmatpush.msra.mxu0 0.0
  %1088 = vmatpush.msra.mxu0 0.0
  %1089 = vmatpush.msra.mxu0 %v1076
  %1090 = vmatpush.msra.mxu0 %v1075
  %1091 = vmatpush.msra.mxu0 %v1074
  %1092 = vmatpush.msra.mxu0 %v1073
  %1093 = vmatmul.f32.gmra.mxu0 %v110
  %v1094 = vpop.f32.mrf.mxu0
  %v1095 = vadd.f32 0.0, %v1094
  %1096 = vmatmul.f32.gmra.mxu0 %v113
  %v1097 = vpop.f32.mrf.mxu0
  %v1098 = vadd.f32 0.0, %v1097
  %1099 = vmatmul.f32.gmra.mxu0 %v116
  %v1100 = vpop.f32.mrf.mxu0
  %v1101 = vadd.f32 0.0, %v1100
  %1102 = vmatmul.f32.gmra.mxu0 %v119
  %v1103 = vpop.f32.mrf.mxu0
  %v1104 = vadd.f32 0.0, %v1103
  %1105 = vdwg.mxu0
  %1106 = vmatpush.msra.mxu0 0.0
  %1107 = vmatpush.msra.mxu0 0.0
  %1108 = vmatpush.msra.mxu0 0.0
  %1109 = vmatpush.msra.mxu0 0.0
  %1110 = vmatpush.msra.mxu0 0.0
  %1111 = vmatpush.msra.mxu0 0.0
  %1112 = vmatpush.msra.mxu0 0.0
  %1113 = vmatpush.msra.mxu0 0.0
  %1114 = vmatpush.msra.mxu0 0.0
  %1115 = vmatpush.msra.mxu0 0.0
  %1116 = vmatpush.msra.mxu0 0.0
  %1117 = vmatpush.msra.mxu0 0.0
  %1118 = vmatpush.msra.mxu0 0.0
  %1119 = vmatpush.msra.mxu0 0.0
  %1120 = vmatpush.msra.mxu0 0.0
  %1121 = vmatpush.msra.mxu0 %v194
  %1122 = vmatmul.f32.gmra.mxu0 %v960
  %v1123 = vpop.f32.mrf.mxu0
  %v1124 = vadd.f32 0.0, %v1123
  %1125 = vmatmul.f32.gmra.mxu0 %v963
  %v1126 = vpop.f32.mrf.mxu0
  %v1127 = vadd.f32 0.0, %v1126
  %1128 = vmatmul.f32.gmra.mxu0 %v966
  %v1129 = vpop.f32.mrf.mxu0
  %v1130 = vadd.f32 0.0, %v1129
  %1131 = vmatmul.f32.gmra.mxu0 %v969
  %v1132 = vpop.f32.mrf.mxu0
  %v1133 = vadd.f32 0.0, %v1132
  %1134 = vdwg.mxu0
  %1135 = vmatpush.msra.mxu0 0.0
  %1136 = vmatpush.msra.mxu0 0.0
  %1137 = vmatpush.msra.mxu0 0.0
  %1138 = vmatpush.msra.mxu0 0.0
  %1139 = vmatpush.msra.mxu0 0.0
  %1140 = vmatpush.msra.mxu0 0.0
  %1141 = vmatpush.msra.mxu0 0.0
  %1142 = vmatpush.msra.mxu0 0.0
  %1143 = vmatpush.msra.mxu0 0.0
  %1144 = vmatpush.msra.mxu0 0.0
  %1145 = vmatpush.msra.mxu0 0.0
  %1146 = vmatpush.msra.mxu0 0.0
  %1147 = vmatpush.msra.mxu0 0.0
  %1148 = vmatpush.msra.mxu0 0.0
  %1149 = vmatpush.msra.mxu0 0.0
  %1150 = vmatpush.msra.mxu0 %v238
  %1151 = vmatmul.f32.gmra.mxu0 %v915
  %v1152 = vpop.f32.mrf.mxu0
  %v1153 = vadd.f32 %v1124, %v1152
  %1154 = vmatmul.f32.gmra.mxu0 %v918
  %v1155 = vpop.f32.mrf.mxu0
  %v1156 = vadd.f32 %v1127, %v1155
  %1157 = vmatmul.f32.gmra.mxu0 %v921
  %v1158 = vpop.f32.mrf.mxu0
  %v1159 = vadd.f32 %v1130, %v1158
  %1160 = vmatmul.f32.gmra.mxu0 %v924
  %v1161 = vpop.f32.mrf.mxu0
  %v1162 = vadd.f32 %v1133, %v1161
  %1163 = vdwg.mxu0
  %v1165 = vsel %vm179, %v1073, 0
  %v1168 = vsel %vm179, %v1074, 0
  %v1171 = vsel %vm179, %v1075, 0
  %v1174 = vsel %vm179, %v1076, 0
  %1176 = vmatpush.msra.mxu0 0.0
  %1177 = vmatpush.msra.mxu0 0.0
  %1178 = vmatpush.msra.mxu0 0.0
  %1179 = vmatpush.msra.mxu0 0.0
  %1180 = vmatpush.msra.mxu0 0.0
  %1181 = vmatpush.msra.mxu0 0.0
  %1182 = vmatpush.msra.mxu0 0.0
  %1183 = vmatpush.msra.mxu0 0.0
  %1184 = vmatpush.msra.mxu0 0.0
  %1185 = vmatpush.msra.mxu0 0.0
  %1186 = vmatpush.msra.mxu0 0.0
  %1187 = vmatpush.msra.mxu0 0.0
  %1188 = vmatpush.msra.mxu0 0.0
  %1189 = vmatpush.msra.mxu0 0.0
  %1190 = vmatpush.msra.mxu0 0.0
  %1191 = vmatpush.msra.mxu0 %v282
  %1192 = vmatmul.f32.gmra.mxu0 %v1165
  %v1193 = vpop.f32.mrf.mxu0
  %v1194 = vadd.f32 0.0, %v1193
  %1195 = vmatmul.f32.gmra.mxu0 %v1168
  %v1196 = vpop.f32.mrf.mxu0
  %v1197 = vadd.f32 0.0, %v1196
  %1198 = vmatmul.f32.gmra.mxu0 %v1171
  %v1199 = vpop.f32.mrf.mxu0
  %v1200 = vadd.f32 0.0, %v1199
  %1201 = vmatmul.f32.gmra.mxu0 %v1174
  %v1202 = vpop.f32.mrf.mxu0
  %v1203 = vadd.f32 0.0, %v1202
  %1204 = vdwg.mxu0
  %v1205 = vadd.f32 %v1153, %v1194
  %v1206 = vadd.f32 %v1156, %v1197
  %v1207 = vadd.f32 %v1159, %v1200
  %v1208 = vadd.f32 %v1162, %v1203
  %v1210 = vsel %vm179, %v1095, 0
  %v1213 = vsel %vm179, %v1098, 0
  %v1216 = vsel %vm179, %v1101, 0
  %v1219 = vsel %vm179, %v1104, 0
  %1221 = vmatpush.msra.mxu0 0.0
  %1222 = vmatpush.msra.mxu0 0.0
  %1223 = vmatpush.msra.mxu0 0.0
  %1224 = vmatpush.msra.mxu0 0.0
  %1225 = vmatpush.msra.mxu0 0.0
  %1226 = vmatpush.msra.mxu0 0.0
  %1227 = vmatpush.msra.mxu0 0.0
  %1228 = vmatpush.msra.mxu0 0.0
  %1229 = vmatpush.msra.mxu0 0.0
  %1230 = vmatpush.msra.mxu0 0.0
  %1231 = vmatpush.msra.mxu0 0.0
  %1232 = vmatpush.msra.mxu0 0.0
  %1233 = vmatpush.msra.mxu0 0.0
  %1234 = vmatpush.msra.mxu0 0.0
  %1235 = vmatpush.msra.mxu0 0.0
  %1236 = vmatpush.msra.mxu0 %v330
  %1237 = vmatmul.f32.gmra.mxu0 %v1210
  %v1238 = vpop.f32.mrf.mxu0
  %v1239 = vadd.f32 0.0, %v1238
  %1240 = vmatmul.f32.gmra.mxu0 %v1213
  %v1241 = vpop.f32.mrf.mxu0
  %v1242 = vadd.f32 0.0, %v1241
  %1243 = vmatmul.f32.gmra.mxu0 %v1216
  %v1244 = vpop.f32.mrf.mxu0
  %v1245 = vadd.f32 0.0, %v1244
  %1246 = vmatmul.f32.gmra.mxu0 %v1219
  %v1247 = vpop.f32.mrf.mxu0
  %v1248 = vadd.f32 0.0, %v1247
  %1249 = vdwg.mxu0
  %v1250 = vadd.f32 %v1205, %v1239
  %v1251 = vadd.f32 %v1206, %v1242
  %v1252 = vadd.f32 %v1207, %v1245
  %v1253 = vadd.f32 %v1208, %v1248
  %v1254 = vadd.f32 %v1250, %v366
  %v1255 = vadd.f32 %v1251, %v366
  %v1256 = vadd.f32 %v1252, %v366
  %v1257 = vadd.f32 %v1253, %v366
  %v1258 = vmax.f32 %v1254, 0.0
  %v1259 = vmax.f32 %v1255, 0.0
  %v1260 = vmax.f32 %v1256, 0.0
  %v1261 = vmax.f32 %v1257, 0.0
  %s1262 = scalar_lea.vmem %s0, 192
  %v1263 = vld [vmem:[%s1262] sm:$0xff]
  %v1264 = vld [vmem:[%s1262 + $0x8] sm:$0xff]
  %v1265 = vld [vmem:[%s1262 + $0x10] sm:$0xff]
  %v1266 = vld [vmem:[%s1262 + $0x18] sm:$0xff]
  %1267 = vmatpush.msra.mxu0 0.0
  %1268 = vmatpush.msra.mxu0 0.0
  %1269 = vmatpush.msra.mxu0 0.0
  %1270 = vmatpush.msra.mxu0 0.0
  %1271 = vmatpush.msra.mxu0 0.0
  %1272 = vmatpush.msra.mxu0 0.0
  %1273 = vmatpush.msra.mxu0 0.0
  %1274 = vmatpush.msra.mxu0 0.0
  %1275 = vmatpush.msra.mxu0 0.0
  %1276 = vmatpush.msra.mxu0 0.0
  %1277 = vmatpush.msra.mxu0 0.0
  %1278 = vmatpush.msra.mxu0 0.0
  %1279 = vmatpush.msra.mxu0 %v1266
  %1280 = vmatpush.msra.mxu0 %v1265
  %1281 = vmatpush.msra.mxu0 %v1264
  %1282 = vmatpush.msra.mxu0 %v1263
  %1283 = vmatmul.f32.gmra.mxu0 %v110
  %v1284 = vpop.f32.mrf.mxu0
  %v1285 = vadd.f32 0.0, %v1284
  %1286 = vmatmul.f32.gmra.mxu0 %v113
  %v1287 = vpop.f32.mrf.mxu0
  %v1288 = vadd.f32 0.0, %v1287
  %1289 = vmatmul.f32.gmra.mxu0 %v116
  %v1290 = vpop.f32.mrf.mxu0
  %v1291 = vadd.f32 0.0, %v1290
  %1292 = vmatmul.f32.gmra.mxu0 %v119
  %v1293 = vpop.f32.mrf.mxu0
  %v1294 = vadd.f32 0.0, %v1293
  %1295 = vdwg.mxu0
  %1296 = vmatpush.msra.mxu0 0.0
  %1297 = vmatpush.msra.mxu0 0.0
  %1298 = vmatpush.msra.mxu0 0.0
  %1299 = vmatpush.msra.mxu0 0.0
  %1300 = vmatpush.msra.mxu0 0.0
  %1301 = vmatpush.msra.mxu0 0.0
  %1302 = vmatpush.msra.mxu0 0.0
  %1303 = vmatpush.msra.mxu0 0.0
  %1304 = vmatpush.msra.mxu0 0.0
  %1305 = vmatpush.msra.mxu0 0.0
  %1306 = vmatpush.msra.mxu0 0.0
  %1307 = vmatpush.msra.mxu0 0.0
  %1308 = vmatpush.msra.mxu0 0.0
  %1309 = vmatpush.msra.mxu0 0.0
  %1310 = vmatpush.msra.mxu0 0.0
  %1311 = vmatpush.msra.mxu0 %v194
  %1312 = vmatmul.f32.gmra.mxu0 %v1210
  %v1313 = vpop.f32.mrf.mxu0
  %v1314 = vadd.f32 0.0, %v1313
  %1315 = vmatmul.f32.gmra.mxu0 %v1213
  %v1316 = vpop.f32.mrf.mxu0
  %v1317 = vadd.f32 0.0, %v1316
  %1318 = vmatmul.f32.gmra.mxu0 %v1216
  %v1319 = vpop.f32.mrf.mxu0
  %v1320 = vadd.f32 0.0, %v1319
  %1321 = vmatmul.f32.gmra.mxu0 %v1219
  %v1322 = vpop.f32.mrf.mxu0
  %v1323 = vadd.f32 0.0, %v1322
  %1324 = vdwg.mxu0
  %1325 = vmatpush.msra.mxu0 0.0
  %1326 = vmatpush.msra.mxu0 0.0
  %1327 = vmatpush.msra.mxu0 0.0
  %1328 = vmatpush.msra.mxu0 0.0
  %1329 = vmatpush.msra.mxu0 0.0
  %1330 = vmatpush.msra.mxu0 0.0
  %1331 = vmatpush.msra.mxu0 0.0
  %1332 = vmatpush.msra.mxu0 0.0
  %1333 = vmatpush.msra.mxu0 0.0
  %1334 = vmatpush.msra.mxu0 0.0
  %1335 = vmatpush.msra.mxu0 0.0
  %1336 = vmatpush.msra.mxu0 0.0
  %1337 = vmatpush.msra.mxu0 0.0
  %1338 = vmatpush.msra.mxu0 0.0
  %1339 = vmatpush.msra.mxu0 0.0
  %1340 = vmatpush.msra.mxu0 %v238
  %1341 = vmatmul.f32.gmra.mxu0 %v1165
  %v1342 = vpop.f32.mrf.mxu0
  %v1343 = vadd.f32 %v1314, %v1342
  %1344 = vmatmul.f32.gmra.mxu0 %v1168
  %v1345 = vpop.f32.mrf.mxu0
  %v1346 = vadd.f32 %v1317, %v1345
  %1347 = vmatmul.f32.gmra.mxu0 %v1171
  %v1348 = vpop.f32.mrf.mxu0
  %v1349 = vadd.f32 %v1320, %v1348
  %1350 = vmatmul.f32.gmra.mxu0 %v1174
  %v1351 = vpop.f32.mrf.mxu0
  %v1352 = vadd.f32 %v1323, %v1351
  %1353 = vdwg.mxu0
  %v1355 = vsel %vm179, %v1263, 0
  %v1358 = vsel %vm179, %v1264, 0
  %v1361 = vsel %vm179, %v1265, 0
  %v1364 = vsel %vm179, %v1266, 0
  %1366 = vmatpush.msra.mxu0 0.0
  %1367 = vmatpush.msra.mxu0 0.0
  %1368 = vmatpush.msra.mxu0 0.0
  %1369 = vmatpush.msra.mxu0 0.0
  %1370 = vmatpush.msra.mxu0 0.0
  %1371 = vmatpush.msra.mxu0 0.0
  %1372 = vmatpush.msra.mxu0 0.0
  %1373 = vmatpush.msra.mxu0 0.0
  %1374 = vmatpush.msra.mxu0 0.0
  %1375 = vmatpush.msra.mxu0 0.0
  %1376 = vmatpush.msra.mxu0 0.0
  %1377 = vmatpush.msra.mxu0 0.0
  %1378 = vmatpush.msra.mxu0 0.0
  %1379 = vmatpush.msra.mxu0 0.0
  %1380 = vmatpush.msra.mxu0 0.0
  %1381 = vmatpush.msra.mxu0 %v282
  %1382 = vmatmul.f32.gmra.mxu0 %v1355
  %v1383 = vpop.f32.mrf.mxu0
  %v1384 = vadd.f32 0.0, %v1383
  %1385 = vmatmul.f32.gmra.mxu0 %v1358
  %v1386 = vpop.f32.mrf.mxu0
  %v1387 = vadd.f32 0.0, %v1386
  %1388 = vmatmul.f32.gmra.mxu0 %v1361
  %v1389 = vpop.f32.mrf.mxu0
  %v1390 = vadd.f32 0.0, %v1389
  %1391 = vmatmul.f32.gmra.mxu0 %v1364
  %v1392 = vpop.f32.mrf.mxu0
  %v1393 = vadd.f32 0.0, %v1392
  %1394 = vdwg.mxu0
  %v1395 = vadd.f32 %v1343, %v1384
  %v1396 = vadd.f32 %v1346, %v1387
  %v1397 = vadd.f32 %v1349, %v1390
  %v1398 = vadd.f32 %v1352, %v1393
  %v1400 = vsel %vm179, %v1285, 0
  %v1403 = vsel %vm179, %v1288, 0
  %v1406 = vsel %vm179, %v1291, 0
  %v1409 = vsel %vm179, %v1294, 0
  %1411 = vmatpush.msra.mxu0 0.0
  %1412 = vmatpush.msra.mxu0 0.0
  %1413 = vmatpush.msra.mxu0 0.0
  %1414 = vmatpush.msra.mxu0 0.0
  %1415 = vmatpush.msra.mxu0 0.0
  %1416 = vmatpush.msra.mxu0 0.0
  %1417 = vmatpush.msra.mxu0 0.0
  %1418 = vmatpush.msra.mxu0 0.0
  %1419 = vmatpush.msra.mxu0 0.0
  %1420 = vmatpush.msra.mxu0 0.0
  %1421 = vmatpush.msra.mxu0 0.0
  %1422 = vmatpush.msra.mxu0 0.0
  %1423 = vmatpush.msra.mxu0 0.0
  %1424 = vmatpush.msra.mxu0 0.0
  %1425 = vmatpush.msra.mxu0 0.0
  %1426 = vmatpush.msra.mxu0 %v330
  %1427 = vmatmul.f32.gmra.mxu0 %v1400
  %v1428 = vpop.f32.mrf.mxu0
  %v1429 = vadd.f32 0.0, %v1428
  %1430 = vmatmul.f32.gmra.mxu0 %v1403
  %v1431 = vpop.f32.mrf.mxu0
  %v1432 = vadd.f32 0.0, %v1431
  %1433 = vmatmul.f32.gmra.mxu0 %v1406
  %v1434 = vpop.f32.mrf.mxu0
  %v1435 = vadd.f32 0.0, %v1434
  %1436 = vmatmul.f32.gmra.mxu0 %v1409
  %v1437 = vpop.f32.mrf.mxu0
  %v1438 = vadd.f32 0.0, %v1437
  %1439 = vdwg.mxu0
  %v1440 = vadd.f32 %v1395, %v1429
  %v1441 = vadd.f32 %v1396, %v1432
  %v1442 = vadd.f32 %v1397, %v1435
  %v1443 = vadd.f32 %v1398, %v1438
  %v1444 = vadd.f32 %v1440, %v366
  %v1445 = vadd.f32 %v1441, %v366
  %v1446 = vadd.f32 %v1442, %v366
  %v1447 = vadd.f32 %v1443, %v366
  %v1448 = vmax.f32 %v1444, 0.0
  %v1449 = vmax.f32 %v1445, 0.0
  %v1450 = vmax.f32 %v1446, 0.0
  %v1451 = vmax.f32 %v1447, 0.0
  %v1452 = vmax.f32 %v1258, %v1448
  %v1453 = vmax.f32 %v1259, %v1449
  %v1454 = vmax.f32 %v1260, %v1450
  %v1455 = vmax.f32 %v1261, %v1451
  %1456 = vmatpush.msra.mxu0 0.0
  %1457 = vmatpush.msra.mxu0 0.0
  %1458 = vmatpush.msra.mxu0 0.0
  %1459 = vmatpush.msra.mxu0 0.0
  %1460 = vmatpush.msra.mxu0 0.0
  %1461 = vmatpush.msra.mxu0 0.0
  %1462 = vmatpush.msra.mxu0 0.0
  %1463 = vmatpush.msra.mxu0 0.0
  %1464 = vmatpush.msra.mxu0 0.0
  %1465 = vmatpush.msra.mxu0 0.0
  %1466 = vmatpush.msra.mxu0 0.0
  %1467 = vmatpush.msra.mxu0 0.0
  %1468 = vmatpush.msra.mxu0 %v1455
  %1469 = vmatpush.msra.mxu0 %v1454
  %1470 = vmatpush.msra.mxu0 %v1453
  %1471 = vmatpush.msra.mxu0 %v1452
  %1472 = vmatmul.f32.gmra.mxu0 %v110
  %v1473 = vpop.f32.mrf.mxu0
  %v1474 = vadd.f32 0.0, %v1473
  %1475 = vmatmul.f32.gmra.mxu0 %v113
  %v1476 = vpop.f32.mrf.mxu0
  %v1477 = vadd.f32 0.0, %v1476
  %1478 = vmatmul.f32.gmra.mxu0 %v116
  %v1479 = vpop.f32.mrf.mxu0
  %v1480 = vadd.f32 0.0, %v1479
  %1481 = vmatmul.f32.gmra.mxu0 %v119
  %v1482 = vpop.f32.mrf.mxu0
  %v1483 = vadd.f32 0.0, %v1482
  %1484 = vdwg.mxu0
  %v1485 = vmax.f32 %v1452, %v1474
  %v1486 = vmax.f32 %v1453, %v1477
  %v1487 = vmax.f32 %v1454, %v1480
  %v1488 = vmax.f32 %v1455, %v1483
  %1489 = vmatpush.msra.mxu0 0.0
  %1490 = vmatpush.msra.mxu0 0.0
  %1491 = vmatpush.msra.mxu0 0.0
  %1492 = vmatpush.msra.mxu0 0.0
  %1493 = vmatpush.msra.mxu0 0.0
  %1494 = vmatpush.msra.mxu0 0.0
  %1495 = vmatpush.msra.mxu0 0.0
  %1496 = vmatpush.msra.mxu0 0.0
  %1497 = vmatpush.msra.mxu0 0.0
  %1498 = vmatpush.msra.mxu0 0.0
  %1499 = vmatpush.msra.mxu0 0.0
  %1500 = vmatpush.msra.mxu0 0.0
  %1501 = vmatpush.msra.mxu0 %v1488
  %1502 = vmatpush.msra.mxu0 %v1487
  %1503 = vmatpush.msra.mxu0 %v1486
  %1504 = vmatpush.msra.mxu0 %v1485
  %1505 = vmatmul.f32.gmra.mxu0 %v604
  %v1506 = vpop.f32.mrf.mxu0
  %v1507 = vadd.f32 0.0, %v1506
  %1508 = vmatmul.f32.gmra.mxu0 %v607
  %v1509 = vpop.f32.mrf.mxu0
  %v1510 = vadd.f32 0.0, %v1509
  %1511 = vdwg.mxu0
  %vm1512 = vcmask 97280
  %v1514 = vsel %vm1512, %v56, 0
  %v1517 = vsel %vm1512, %v57, 0
  %vm1519 = vcmask 1043456
  %v1521 = vsel %vm1519, %v630, 0
  %1523 = vmatpush.msra.mxu0 0.0
  %1524 = vmatpush.msra.mxu0 0.0
  %1525 = vmatpush.msra.mxu0 0.0
  %1526 = vmatpush.msra.mxu0 0.0
  %1527 = vmatpush.msra.mxu0 0.0
  %1528 = vmatpush.msra.mxu0 0.0
  %1529 = vmatpush.msra.mxu0 0.0
  %1530 = vmatpush.msra.mxu0 0.0
  %1531 = vmatpush.msra.mxu0 0.0
  %1532 = vmatpush.msra.mxu0 0.0
  %1533 = vmatpush.msra.mxu0 0.0
  %1534 = vmatpush.msra.mxu0 0.0
  %1535 = vmatpush.msra.mxu0 0.0
  %1536 = vmatpush.msra.mxu0 0.0
  %1537 = vmatpush.msra.mxu0 %v1521
  %1538 = vmatpush.msra.mxu0 %v627
  %1539 = vmatmul.f32.gmra.mxu0 %v1514
  %v1540 = vpop.f32.mrf.mxu0
  %v1541 = vadd.f32 0.0, %v1540
  %1542 = vmatmul.f32.gmra.mxu0 %v1517
  %v1543 = vpop.f32.mrf.mxu0
  %v1544 = vadd.f32 0.0, %v1543
  %1545 = vdwg.mxu0
  %v1547 = vsel %vm1519, %v1070, 0
  %1549 = vmatpush.msra.mxu0 0.0
  %1550 = vmatpush.msra.mxu0 0.0
  %1551 = vmatpush.msra.mxu0 0.0
  %1552 = vmatpush.msra.mxu0 0.0
  %1553 = vmatpush.msra.mxu0 0.0
  %1554 = vmatpush.msra.mxu0 0.0
  %1555 = vmatpush.msra.mxu0 0.0
  %1556 = vmatpush.msra.mxu0 0.0
  %1557 = vmatpush.msra.mxu0 0.0
  %1558 = vmatpush.msra.mxu0 0.0
  %1559 = vmatpush.msra.mxu0 0.0
  %1560 = vmatpush.msra.mxu0 0.0
  %1561 = vmatpush.msra.mxu0 0.0
  %1562 = vmatpush.msra.mxu0 0.0
  %1563 = vmatpush.msra.mxu0 %v1547
  %1564 = vmatpush.msra.mxu0 %v1067
  %1565 = vmatmul.f32.gmra.mxu0 %v1514
  %v1566 = vpop.f32.mrf.mxu0
  %v1567 = vadd.f32 0.0, %v1566
  %1568 = vmatmul.f32.gmra.mxu0 %v1517
  %v1569 = vpop.f32.mrf.mxu0
  %v1570 = vadd.f32 0.0, %v1569
  %1571 = vdwg.mxu0
  %vm1572 = vcmask 130048
  %v1574 = vsel %vm1572, %v1541, 0
  %v1577 = vsel %vm1572, %v1544, 0
  %1579 = vmatpush.msra.mxu0 0.0
  %1580 = vmatpush.msra.mxu0 0.0
  %1581 = vmatpush.msra.mxu0 0.0
  %1582 = vmatpush.msra.mxu0 0.0
  %1583 = vmatpush.msra.mxu0 0.0
  %1584 = vmatpush.msra.mxu0 0.0
  %1585 = vmatpush.msra.mxu0 0.0
  %1586 = vmatpush.msra.mxu0 0.0
  %1587 = vmatpush.msra.mxu0 0.0
  %1588 = vmatpush.msra.mxu0 0.0
  %1589 = vmatpush.msra.mxu0 0.0
  %1590 = vmatpush.msra.mxu0 0.0
  %1591 = vmatpush.msra.mxu0 0.0
  %1592 = vmatpush.msra.mxu0 0.0
  %1593 = vmatpush.msra.mxu0 %v70
  %1594 = vmatpush.msra.mxu0 %v69
  %1595 = vmatmul.f32.gmra.mxu0 %v1574
  %v1596 = vpop.f32.mrf.mxu0
  %v1597 = vadd.f32 0.0, %v1596
  %1598 = vmatmul.f32.gmra.mxu0 %v1577
  %v1599 = vpop.f32.mrf.mxu0
  %v1600 = vadd.f32 0.0, %v1599
  %1601 = vdwg.mxu0
  %v1603 = vsel %vm1572, %v627, 0
  %v1605 = vsel %vm1572, %v630, 0
  %1607 = vmatpush.msra.mxu0 0.0
  %1608 = vmatpush.msra.mxu0 0.0
  %1609 = vmatpush.msra.mxu0 0.0
  %1610 = vmatpush.msra.mxu0 0.0
  %1611 = vmatpush.msra.mxu0 0.0
  %1612 = vmatpush.msra.mxu0 0.0
  %1613 = vmatpush.msra.mxu0 0.0
  %1614 = vmatpush.msra.mxu0 0.0
  %1615 = vmatpush.msra.mxu0 0.0
  %1616 = vmatpush.msra.mxu0 0.0
  %1617 = vmatpush.msra.mxu0 0.0
  %1618 = vmatpush.msra.mxu0 0.0
  %1619 = vmatpush.msra.mxu0 0.0
  %1620 = vmatpush.msra.mxu0 0.0
  %1621 = vmatpush.msra.mxu0 %v67
  %1622 = vmatpush.msra.mxu0 %v66
  %1623 = vmatmul.f32.gmra.mxu0 %v1603
  %v1624 = vpop.f32.mrf.mxu0
  %v1625 = vadd.f32 %v1597, %v1624
  %1626 = vmatmul.f32.gmra.mxu0 %v1605
  %v1627 = vpop.f32.mrf.mxu0
  %v1628 = vadd.f32 %v1600, %v1627
  %1629 = vdwg.mxu0
  %v1631 = vsel %vm1572, %v1067, 0
  %v1633 = vsel %vm1572, %v1070, 0
  %1635 = vmatpush.msra.mxu0 0.0
  %1636 = vmatpush.msra.mxu0 0.0
  %1637 = vmatpush.msra.mxu0 0.0
  %1638 = vmatpush.msra.mxu0 0.0
  %1639 = vmatpush.msra.mxu0 0.0
  %1640 = vmatpush.msra.mxu0 0.0
  %1641 = vmatpush.msra.mxu0 0.0
  %1642 = vmatpush.msra.mxu0 0.0
  %1643 = vmatpush.msra.mxu0 0.0
  %1644 = vmatpush.msra.mxu0 0.0
  %1645 = vmatpush.msra.mxu0 0.0
  %1646 = vmatpush.msra.mxu0 0.0
  %1647 = vmatpush.msra.mxu0 0.0
  %1648 = vmatpush.msra.mxu0 0.0
  %1649 = vmatpush.msra.mxu0 %v73
  %1650 = vmatpush.msra.mxu0 %v72
  %1651 = vmatmul.f32.gmra.mxu0 %v1631
  %v1652 = vpop.f32.mrf.mxu0
  %v1653 = vadd.f32 0.0, %v1652
  %1654 = vmatmul.f32.gmra.mxu0 %v1633
  %v1655 = vpop.f32.mrf.mxu0
  %v1656 = vadd.f32 0.0, %v1655
  %1657 = vdwg.mxu0
  %v1658 = vadd.f32 %v1625, %v1653
  %v1659 = vadd.f32 %v1628, %v1656
  %v1661 = vsel %vm1572, %v1567, 0
  %v1664 = vsel %vm1572, %v1570, 0
  %1666 = vmatpush.msra.mxu0 0.0
  %1667 = vmatpush.msra.mxu0 0.0
  %1668 = vmatpush.msra.mxu0 0.0
  %1669 = vmatpush.msra.mxu0 0.0
  %1670 = vmatpush.msra.mxu0 0.0
  %1671 = vmatpush.msra.mxu0 0.0
  %1672 = vmatpush.msra.mxu0 0.0
  %1673 = vmatpush.msra.mxu0 0.0
  %1674 = vmatpush.msra.mxu0 0.0
  %1675 = vmatpush.msra.mxu0 0.0
  %1676 = vmatpush.msra.mxu0 0.0
  %1677 = vmatpush.msra.mxu0 0.0
  %1678 = vmatpush.msra.mxu0 0.0
  %1679 = vmatpush.msra.mxu0 0.0
  %1680 = vmatpush.msra.mxu0 %v76
  %1681 = vmatpush.msra.mxu0 %v75
  %1682 = vmatmul.f32.gmra.mxu0 %v1661
  %v1683 = vpop.f32.mrf.mxu0
  %v1684 = vadd.f32 0.0, %v1683
  %1685 = vmatmul.f32.gmra.mxu0 %v1664
  %v1686 = vpop.f32.mrf.mxu0
  %v1687 = vadd.f32 0.0, %v1686
  %1688 = vdwg.mxu0
  %v1689 = vadd.f32 %v1658, %v1684
  %v1690 = vadd.f32 %v1659, %v1687
  %v1692 = vperm.slane %v97, 0
  %v1694 = vadd.f32 %v1689, %v1692
  %v1695 = vadd.f32 %v1690, %v1692
  %v1696 = vmax.f32 %v1694, 0.0
  %v1697 = vmax.f32 %v1695, 0.0
  %v1699 = vsel %vm1519, %v1510, 0
  %1701 = vmatpush.msra.mxu0 0.0
  %1702 = vmatpush.msra.mxu0 0.0
  %1703 = vmatpush.msra.mxu0 0.0
  %1704 = vmatpush.msra.mxu0 0.0
  %1705 = vmatpush.msra.mxu0 0.0
  %1706 = vmatpush.msra.mxu0 0.0
  %1707 = vmatpush.msra.mxu0 0.0
  %1708 = vmatpush.msra.mxu0 0.0
  %1709 = vmatpush.msra.mxu0 0.0
  %1710 = vmatpush.msra.mxu0 0.0
  %1711 = vmatpush.msra.mxu0 0.0
  %1712 = vmatpush.msra.mxu0 0.0
  %1713 = vmatpush.msra.mxu0 0.0
  %1714 = vmatpush.msra.mxu0 0.0
  %1715 = vmatpush.msra.mxu0 %v1699
  %1716 = vmatpush.msra.mxu0 %v1507
  %1717 = vmatmul.f32.gmra.mxu0 %v1514
  %v1718 = vpop.f32.mrf.mxu0
  %v1719 = vadd.f32 0.0, %v1718
  %1720 = vmatmul.f32.gmra.mxu0 %v1517
  %v1721 = vpop.f32.mrf.mxu0
  %v1722 = vadd.f32 0.0, %v1721
  %1723 = vdwg.mxu0
  %1724 = vmatpush.msra.mxu0 0.0
  %1725 = vmatpush.msra.mxu0 0.0
  %1726 = vmatpush.msra.mxu0 0.0
  %1727 = vmatpush.msra.mxu0 0.0
  %1728 = vmatpush.msra.mxu0 0.0
  %1729 = vmatpush.msra.mxu0 0.0
  %1730 = vmatpush.msra.mxu0 0.0
  %1731 = vmatpush.msra.mxu0 0.0
  %1732 = vmatpush.msra.mxu0 0.0
  %1733 = vmatpush.msra.mxu0 0.0
  %1734 = vmatpush.msra.mxu0 0.0
  %1735 = vmatpush.msra.mxu0 0.0
  %1736 = vmatpush.msra.mxu0 0.0
  %1737 = vmatpush.msra.mxu0 0.0
  %1738 = vmatpush.msra.mxu0 %v70
  %1739 = vmatpush.msra.mxu0 %v69
  %1740 = vmatmul.f32.gmra.mxu0 %v1661
  %v1741 = vpop.f32.mrf.mxu0
  %v1742 = vadd.f32 0.0, %v1741
  %1743 = vmatmul.f32.gmra.mxu0 %v1664
  %v1744 = vpop.f32.mrf.mxu0
  %v1745 = vadd.f32 0.0, %v1744
  %1746 = vdwg.mxu0
  %1747 = vmatpush.msra.mxu0 0.0
  %1748 = vmatpush.msra.mxu0 0.0
  %1749 = vmatpush.msra.mxu0 0.0
  %1750 = vmatpush.msra.mxu0 0.0
  %1751 = vmatpush.msra.mxu0 0.0
  %1752 = vmatpush.msra.mxu0 0.0
  %1753 = vmatpush.msra.mxu0 0.0
  %1754 = vmatpush.msra.mxu0 0.0
  %1755 = vmatpush.msra.mxu0 0.0
  %1756 = vmatpush.msra.mxu0 0.0
  %1757 = vmatpush.msra.mxu0 0.0
  %1758 = vmatpush.msra.mxu0 0.0
  %1759 = vmatpush.msra.mxu0 0.0
  %1760 = vmatpush.msra.mxu0 0.0
  %1761 = vmatpush.msra.mxu0 %v67
  %1762 = vmatpush.msra.mxu0 %v66
  %1763 = vmatmul.f32.gmra.mxu0 %v1631
  %v1764 = vpop.f32.mrf.mxu0
  %v1765 = vadd.f32 %v1742, %v1764
  %1766 = vmatmul.f32.gmra.mxu0 %v1633
  %v1767 = vpop.f32.mrf.mxu0
  %v1768 = vadd.f32 %v1745, %v1767
  %1769 = vdwg.mxu0
  %v1771 = vsel %vm1572, %v1507, 0
  %v1773 = vsel %vm1572, %v1510, 0
  %1775 = vmatpush.msra.mxu0 0.0
  %1776 = vmatpush.msra.mxu0 0.0
  %1777 = vmatpush.msra.mxu0 0.0
  %1778 = vmatpush.msra.mxu0 0.0
  %1779 = vmatpush.msra.mxu0 0.0
  %1780 = vmatpush.msra.mxu0 0.0
  %1781 = vmatpush.msra.mxu0 0.0
  %1782 = vmatpush.msra.mxu0 0.0
  %1783 = vmatpush.msra.mxu0 0.0
  %1784 = vmatpush.msra.mxu0 0.0
  %1785 = vmatpush.msra.mxu0 0.0
  %1786 = vmatpush.msra.mxu0 0.0
  %1787 = vmatpush.msra.mxu0 0.0
  %1788 = vmatpush.msra.mxu0 0.0
  %1789 = vmatpush.msra.mxu0 %v73
  %1790 = vmatpush.msra.mxu0 %v72
  %1791 = vmatmul.f32.gmra.mxu0 %v1771
  %v1792 = vpop.f32.mrf.mxu0
  %v1793 = vadd.f32 0.0, %v1792
  %1794 = vmatmul.f32.gmra.mxu0 %v1773
  %v1795 = vpop.f32.mrf.mxu0
  %v1796 = vadd.f32 0.0, %v1795
  %1797 = vdwg.mxu0
  %v1798 = vadd.f32 %v1765, %v1793
  %v1799 = vadd.f32 %v1768, %v1796
  %v1801 = vsel %vm1572, %v1719, 0
  %v1804 = vsel %vm1572, %v1722, 0
  %1806 = vmatpush.msra.mxu0 0.0
  %1807 = vmatpush.msra.mxu0 0.0
  %1808 = vmatpush.msra.mxu0 0.0
  %1809 = vmatpush.msra.mxu0 0.0
  %1810 = vmatpush.msra.mxu0 0.0
  %1811 = vmatpush.msra.mxu0 0.0
  %1812 = vmatpush.msra.mxu0 0.0
  %1813 = vmatpush.msra.mxu0 0.0
  %1814 = vmatpush.msra.mxu0 0.0
  %1815 = vmatpush.msra.mxu0 0.0
  %1816 = vmatpush.msra.mxu0 0.0
  %1817 = vmatpush.msra.mxu0 0.0
  %1818 = vmatpush.msra.mxu0 0.0
  %1819 = vmatpush.msra.mxu0 0.0
  %1820 = vmatpush.msra.mxu0 %v76
  %1821 = vmatpush.msra.mxu0 %v75
  %1822 = vmatmul.f32.gmra.mxu0 %v1801
  %v1823 = vpop.f32.mrf.mxu0
  %v1824 = vadd.f32 0.0, %v1823
  %1825 = vmatmul.f32.gmra.mxu0 %v1804
  %v1826 = vpop.f32.mrf.mxu0
  %v1827 = vadd.f32 0.0, %v1826
  %1828 = vdwg.mxu0
  %v1829 = vadd.f32 %v1798, %v1824
  %v1830 = vadd.f32 %v1799, %v1827
  %v1831 = vadd.f32 %v1829, %v1692
  %v1832 = vadd.f32 %v1830, %v1692
  %v1833 = vmax.f32 %v1831, 0.0
  %v1834 = vmax.f32 %v1832, 0.0
  %v1836 = vsel %vm1519, %v1697, 0
  %1838 = vmatpush.msra.mxu0 0.0
  %1839 = vmatpush.msra.mxu0 0.0
  %1840 = vmatpush.msra.mxu0 0.0
  %1841 = vmatpush.msra.mxu0 0.0
  %1842 = vmatpush.msra.mxu0 0.0
  %1843 = vmatpush.msra.mxu0 0.0
  %1844 = vmatpush.msra.mxu0 0.0
  %1845 = vmatpush.msra.mxu0 0.0
  %1846 = vmatpush.msra.mxu0 0.0
  %1847 = vmatpush.msra.mxu0 0.0
  %1848 = vmatpush.msra.mxu0 0.0
  %1849 = vmatpush.msra.mxu0 0.0
  %1850 = vmatpush.msra.mxu0 0.0
  %1851 = vmatpush.msra.mxu0 0.0
  %1852 = vmatpush.msra.mxu0 %v1836
  %1853 = vmatpush.msra.mxu0 %v1696
  %1854 = vmatmul.f32.gmra.mxu0 %v1514
  %v1855 = vpop.f32.mrf.mxu0
  %v1856 = vadd.f32 0.0, %v1855
  %1857 = vmatmul.f32.gmra.mxu0 %v1517
  %v1858 = vpop.f32.mrf.mxu0
  %v1859 = vadd.f32 0.0, %v1858
  %1860 = vdwg.mxu0
  %v1862 = vsel %vm1519, %v1834, 0
  %1864 = vmatpush.msra.mxu0 0.0
  %1865 = vmatpush.msra.mxu0 0.0
  %1866 = vmatpush.msra.mxu0 0.0
  %1867 = vmatpush.msra.mxu0 0.0
  %1868 = vmatpush.msra.mxu0 0.0
  %1869 = vmatpush.msra.mxu0 0.0
  %1870 = vmatpush.msra.mxu0 0.0
  %1871 = vmatpush.msra.mxu0 0.0
  %1872 = vmatpush.msra.mxu0 0.0
  %1873 = vmatpush.msra.mxu0 0.0
  %1874 = vmatpush.msra.mxu0 0.0
  %1875 = vmatpush.msra.mxu0 0.0
  %1876 = vmatpush.msra.mxu0 0.0
  %1877 = vmatpush.msra.mxu0 0.0
  %1878 = vmatpush.msra.mxu0 %v1862
  %1879 = vmatpush.msra.mxu0 %v1833
  %1880 = vmatmul.f32.gmra.mxu0 %v1514
  %v1881 = vpop.f32.mrf.mxu0
  %v1882 = vadd.f32 0.0, %v1881
  %1883 = vmatmul.f32.gmra.mxu0 %v1517
  %v1884 = vpop.f32.mrf.mxu0
  %v1885 = vadd.f32 0.0, %v1884
  %1886 = vdwg.mxu0
  %v1888 = vsel %vm108, %v1856, 0
  %v1891 = vsel %vm108, %v1859, 0
  %1893 = vmatpush.msra.mxu0 0.0
  %1894 = vmatpush.msra.mxu0 0.0
  %1895 = vmatpush.msra.mxu0 0.0
  %1896 = vmatpush.msra.mxu0 0.0
  %1897 = vmatpush.msra.mxu0 0.0
  %1898 = vmatpush.msra.mxu0 0.0
  %1899 = vmatpush.msra.mxu0 0.0
  %1900 = vmatpush.msra.mxu0 0.0
  %1901 = vmatpush.msra.mxu0 0.0
  %1902 = vmatpush.msra.mxu0 0.0
  %1903 = vmatpush.msra.mxu0 0.0
  %1904 = vmatpush.msra.mxu0 0.0
  %1905 = vmatpush.msra.mxu0 %v85
  %1906 = vmatpush.msra.mxu0 %v84
  %1907 = vmatpush.msra.mxu0 %v83
  %1908 = vmatpush.msra.mxu0 %v82
  %1909 = vmatmul.f32.gmra.mxu0 %v1888
  %v1910 = vpop.f32.mrf.mxu0
  %v1911 = vadd.f32 0.0, %v1910
  %1912 = vmatmul.f32.gmra.mxu0 %v1891
  %v1913 = vpop.f32.mrf.mxu0
  %v1914 = vadd.f32 0.0, %v1913
  %1915 = vdwg.mxu0
  %v1917 = vsel %vm108, %v1696, 0
  %v1919 = vsel %vm108, %v1697, 0
  %1921 = vmatpush.msra.mxu0 0.0
  %1922 = vmatpush.msra.mxu0 0.0
  %1923 = vmatpush.msra.mxu0 0.0
  %1924 = vmatpush.msra.mxu0 0.0
  %1925 = vmatpush.msra.mxu0 0.0
  %1926 = vmatpush.msra.mxu0 0.0
  %1927 = vmatpush.msra.mxu0 0.0
  %1928 = vmatpush.msra.mxu0 0.0
  %1929 = vmatpush.msra.mxu0 0.0
  %1930 = vmatpush.msra.mxu0 0.0
  %1931 = vmatpush.msra.mxu0 0.0
  %1932 = vmatpush.msra.mxu0 0.0
  %1933 = vmatpush.msra.mxu0 %v80
  %1934 = vmatpush.msra.mxu0 %v79
  %1935 = vmatpush.msra.mxu0 %v78
  %1936 = vmatpush.msra.mxu0 %v77
  %1937 = vmatmul.f32.gmra.mxu0 %v1917
  %v1938 = vpop.f32.mrf.mxu0
  %v1939 = vadd.f32 %v1911, %v1938
  %1940 = vmatmul.f32.gmra.mxu0 %v1919
  %v1941 = vpop.f32.mrf.mxu0
  %v1942 = vadd.f32 %v1914, %v1941
  %1943 = vdwg.mxu0
  %v1945 = vsel %vm108, %v1833, 0
  %v1947 = vsel %vm108, %v1834, 0
  %1949 = vmatpush.msra.mxu0 0.0
  %1950 = vmatpush.msra.mxu0 0.0
  %1951 = vmatpush.msra.mxu0 0.0
  %1952 = vmatpush.msra.mxu0 0.0
  %1953 = vmatpush.msra.mxu0 0.0
  %1954 = vmatpush.msra.mxu0 0.0
  %1955 = vmatpush.msra.mxu0 0.0
  %1956 = vmatpush.msra.mxu0 0.0
  %1957 = vmatpush.msra.mxu0 0.0
  %1958 = vmatpush.msra.mxu0 0.0
  %1959 = vmatpush.msra.mxu0 0.0
  %1960 = vmatpush.msra.mxu0 0.0
  %1961 = vmatpush.msra.mxu0 %v90
  %1962 = vmatpush.msra.mxu0 %v89
  %1963 = vmatpush.msra.mxu0 %v88
  %1964 = vmatpush.msra.mxu0 %v87
  %1965 = vmatmul.f32.gmra.mxu0 %v1945
  %v1966 = vpop.f32.mrf.mxu0
  %v1967 = vadd.f32 0.0, %v1966
  %1968 = vmatmul.f32.gmra.mxu0 %v1947
  %v1969 = vpop.f32.mrf.mxu0
  %v1970 = vadd.f32 0.0, %v1969
  %1971 = vdwg.mxu0
  %v1972 = vadd.f32 %v1939, %v1967
  %v1973 = vadd.f32 %v1942, %v1970
  %v1975 = vsel %vm108, %v1882, 0
  %v1978 = vsel %vm108, %v1885, 0
  %1980 = vmatpush.msra.mxu0 0.0
  %1981 = vmatpush.msra.mxu0 0.0
  %1982 = vmatpush.msra.mxu0 0.0
  %1983 = vmatpush.msra.mxu0 0.0
  %1984 = vmatpush.msra.mxu0 0.0
  %1985 = vmatpush.msra.mxu0 0.0
  %1986 = vmatpush.msra.mxu0 0.0
  %1987 = vmatpush.msra.mxu0 0.0
  %1988 = vmatpush.msra.mxu0 0.0
  %1989 = vmatpush.msra.mxu0 0.0
  %1990 = vmatpush.msra.mxu0 0.0
  %1991 = vmatpush.msra.mxu0 0.0
  %1992 = vmatpush.msra.mxu0 %v95
  %1993 = vmatpush.msra.mxu0 %v94
  %1994 = vmatpush.msra.mxu0 %v93
  %1995 = vmatpush.msra.mxu0 %v92
  %1996 = vmatmul.f32.gmra.mxu0 %v1975
  %v1997 = vpop.f32.mrf.mxu0
  %v1998 = vadd.f32 0.0, %v1997
  %1999 = vmatmul.f32.gmra.mxu0 %v1978
  %v2000 = vpop.f32.mrf.mxu0
  %v2001 = vadd.f32 0.0, %v2000
  %2002 = vdwg.mxu0
  %v2003 = vadd.f32 %v1972, %v1998
  %v2004 = vadd.f32 %v1973, %v2001
  %v2006 = vperm.slane %v98, 0
  %v2008 = vadd.f32 %v2003, %v2006
  %v2009 = vadd.f32 %v2004, %v2006
  %v2010 = vmax.f32 %v2008, 0.0
  %v2011 = vmax.f32 %v2009, 0.0
  %v2013 = vsel %vm1512, %v58, 0
  %v2016 = vsel %vm1519, %v2011, 0
  %2018 = vmatpush.msra.mxu0 0.0
  %2019 = vmatpush.msra.mxu0 0.0
  %2020 = vmatpush.msra.mxu0 0.0
  %2021 = vmatpush.msra.mxu0 0.0
  %2022 = vmatpush.msra.mxu0 0.0
  %2023 = vmatpush.msra.mxu0 0.0
  %2024 = vmatpush.msra.mxu0 0.0
  %2025 = vmatpush.msra.mxu0 0.0
  %2026 = vmatpush.msra.mxu0 0.0
  %2027 = vmatpush.msra.mxu0 0.0
  %2028 = vmatpush.msra.mxu0 0.0
  %2029 = vmatpush.msra.mxu0 0.0
  %2030 = vmatpush.msra.mxu0 0.0
  %2031 = vmatpush.msra.mxu0 0.0
  %2032 = vmatpush.msra.mxu0 %v2016
  %2033 = vmatpush.msra.mxu0 %v2010
  %2034 = vmatmul.f32.gmra.mxu0 %v2013
  %v2035 = vpop.f32.mrf.mxu0
  %v2036 = vadd.f32 0.0, %v2035
  %2037 = vdwg.mxu0
  %v2038 = vld [vmem:[%s11] sm:$0xff]
  %v2039 = vld [vmem:[%s11 + $0x8] sm:$0xff]
  %v2040 = vld [vmem:[%s11 + $0x10] sm:$0xff]
  %v2041 = vld [vmem:[%s11 + $0x18] sm:$0xff]
  %v2042 = vld [vmem:[%s11 + $0x20] sm:$0xff]
  %v2043 = vld [vmem:[%s11 + $0x28] sm:$0xff]
  %v2044 = vld [vmem:[%s11 + $0x30] sm:$0xff]
  %v2045 = vld [vmem:[%s11 + $0x38] sm:$0xff]
  %v2046 = vld [vmem:[%s12] sm:$0x1]
  %v2048 = vperm.slane %v2046, 0
  %vm2050 = vcmask 523264
  %v2052 = vsel %vm2050, %v2036, 0
  %2054 = vmatpush.msra.mxu0 0.0
  %2055 = vmatpush.msra.mxu0 0.0
  %2056 = vmatpush.msra.mxu0 0.0
  %2057 = vmatpush.msra.mxu0 0.0
  %2058 = vmatpush.msra.mxu0 0.0
  %2059 = vmatpush.msra.mxu0 0.0
  %2060 = vmatpush.msra.mxu0 0.0
  %2061 = vmatpush.msra.mxu0 0.0
  %2062 = vmatpush.msra.mxu0 %v2045
  %2063 = vmatpush.msra.mxu0 %v2044
  %2064 = vmatpush.msra.mxu0 %v2043
  %2065 = vmatpush.msra.mxu0 %v2042
  %2066 = vmatpush.msra.mxu0 %v2041
  %2067 = vmatpush.msra.mxu0 %v2040
  %2068 = vmatpush.msra.mxu0 %v2039
  %2069 = vmatpush.msra.mxu0 %v2038
  %2070 = vmatmul.f32.gmra.mxu0 %v2052
  %v2071 = vpop.f32.mrf.mxu0
  %v2072 = vadd.f32 %v2048, %v2071
  %2073 = vdwg.mxu0
  %v2074 = vtanh.pop %v2072
  %v2075 = vld [vmem:[%s13] sm:$0xff]
  %v2076 = vld [vmem:[%s13 + $0x8] sm:$0xff]
  %v2077 = vld [vmem:[%s13 + $0x10] sm:$0xff]
  %v2078 = vld [vmem:[%s13 + $0x18] sm:$0xff]
  %v2079 = vld [vmem:[%s13 + $0x20] sm:$0xff]
  %v2080 = vld [vmem:[%s13 + $0x28] sm:$0xff]
  %v2081 = vld [vmem:[%s13 + $0x30] sm:$0xff]
  %v2082 = vld [vmem:[%s13 + $0x38] sm:$0xff]
  %v2083 = vld [vmem:[%s13 + $0x40] sm:$0xff]
  %v2084 = vld [vmem:[%s13 + $0x48] sm:$0xff]
  %v2085 = vld [vmem:[%s13 + $0x50] sm:$0xff]
  %v2086 = vld [vmem:[%s13 + $0x58] sm:$0xff]
  %v2087 = vld [vmem:[%s13 + $0x60] sm:$0xff]
  %v2088 = vld [vmem:[%s13 + $0x68] sm:$0xff]
  %v2089 = vld [vmem:[%s13 + $0x70] sm:$0xff]
  %v2090 = vld [vmem:[%s13 + $0x78] sm:$0xff]
  %v2091 = vld [vmem:[%s14] sm:$0x1]
  %v2093 = vperm.slane %v2091, 0
  %2095 = vmatpush.msra.mxu0 %v2090
  %2096 = vmatpush.msra.mxu0 %v2089
  %2097 = vmatpush.msra.mxu0 %v2088
  %2098 = vmatpush.msra.mxu0 %v2087
  %2099 = vmatpush.msra.mxu0 %v2086
  %2100 = vmatpush.msra.mxu0 %v2085
  %2101 = vmatpush.msra.mxu0 %v2084
  %2102 = vmatpush.msra.mxu0 %v2083
  %2103 = vmatpush.msra.mxu0 %v2082
  %2104 = vmatpush.msra.mxu0 %v2081
  %2105 = vmatpush.msra.mxu0 %v2080
  %2106 = vmatpush.msra.mxu0 %v2079
  %2107 = vmatpush.msra.mxu0 %v2078
  %2108 = vmatpush.msra.mxu0 %v2077
  %2109 = vmatpush.msra.mxu0 %v2076
  %2110 = vmatpush.msra.mxu0 %v2075
  %2111 = vmatmul.f32.gmra.mxu0 %v2074
  %v2112 = vpop.f32.mrf.mxu0
  %v2113 = vadd.f32 %v2093, %v2112
  %2114 = vdwg.mxu0
  %vm2115 = vcmask 19456
  %v2116 = vsel %vm2115, %v2113, -inf
  %2117 = vmax.xlane.f32.xlu0 %v2116
  %v2118 = vpop.xlane.xlu0 %2117
  %v2119 = vsub.f32 %v2113, %v2118
  %v2120 = vmul.f32 %v2119, 1.442695
  %v2121 = vpow.pop %v2120
  %v2122 = vsel %vm2115, %v2121, 0.0
  %2123 = vadd.xlane.f32.xlu0 %v2122
  %v2124 = vpop.xlane.xlu0 %2123
  %v2125 = vlog2.pop %v2124
  %v2126 = vmul.f32 %v2125, 0.6931472
  %v2127 = vadd.f32 %v2118, %v2126
  %v2128 = vsub.f32 %v2113, %v2127
  %2129 = vst.msk [vmem:[%s15] sm:$0xf] %vm2115, %v2128
  %vm2130 = vcmask 27672
  %2131 = vst.msk [vmem:[%s15] sm:$0xf] %vm2130, %v2113
  // Predicated region
  $region62: #{ac_forward.1} parent=0 // pred_check
    _
  $region63: #{ac_forward.1} parent=0 // pred_check_branch
    %2133 = sbr.rel (0) target = $region65
  $region64: #{ac_forward.1} parent=0 // pred_region
    _
  $region65: #{ac_forward.1} parent=0 // pred_fallthru
    _
  // Predicated region
  $region66: #{ac_forward.1} parent=0 // pred_check
    _
  $region67: #{ac_forward.1} parent=0 // pred_check_branch
    %2135 = sbr.rel (0) target = $region69
  $region68: #{ac_forward.1} parent=0 // pred_region
    _
  $region69: #{ac_forward.1} parent=0 // pred_fallthru
    _

</llo_original>
